<compile_context>
chip_gen: v5e
topology: v5e:2x2
jax: 0.10.0
libtpu: 0.0.40
codegen_flags: <defaults>
</compile_context>

<pallas_src>
import functools

import jax
import jax.numpy as jnp
from jax import lax
from jax.experimental import pallas as pl
from jax.experimental.pallas import tpu as pltpu


def _round_up(x, m):
    return ((x + m - 1) // m) * m


def _prep_tiles(hw, c):
    """Pick (chunk_lanes, chunks_per_tile) for the prep kernel.

    chunk_lanes:     lanes per statically-unrolled compute chunk; power-of-two
                     multiple of 128 so the Lovasz kernel can sub-chunk evenly;
                     sized so one (C, chunk) f32 temporary is ~8K elements.
    chunks_per_tile: sized so one (C, T) DMA stream is ~0.25-0.5 MiB (past the
                     HBM-roofline knee) while bounding unrolled code size.
    """
    hw128 = _round_up(hw, 128)
    ch = 128
    while ch * 2 <= min(2048, hw128) and c * (ch * 2) <= 8192:
        ch *= 2
    n = (1 << 18) // max(c * ch, 1)
    n = max(1, min(n, 16, -(-hw // ch)))
    return ch, n


# ----------------------------------------------------------------------------
# Kernel 1: per-pixel prep in (C sublane, pixel lane) layout.
#   - argmax(target) over classes (first max wins), mask==0 -> "ignored"
#   - softmax / log-softmax over classes (single (1,T) reciprocal)
#   - per-pixel CE + valid count (per-batch lane-dense accumulators)
#   - ONE packed output per pixel/class: f32 key = -err with fg in the LSB
#   - per-class foreground counts gts (per-batch accumulator)
# ----------------------------------------------------------------------------
def _prep_kernel(pred_ref, tgt_ref, mask_ref,
                 packed_ref, ce_ref, cnt_ref, gts_ref, *, hw, ch, n_chunks):
    j = pl.program_id(1)

    @pl.when(j == 0)
    def _():
        ce_ref[...] = jnp.zeros_like(ce_ref)
        cnt_ref[...] = jnp.zeros_like(cnt_ref)
        gts_ref[...] = jnp.zeros_like(gts_ref)

    C = pred_ref.shape[0]
    t_total = ch * n_chunks

    lane = lax.broadcasted_iota(jnp.int32, (1, ch), 1)
    rowf = lax.broadcasted_iota(jnp.int32, (C, ch), 0).astype(jnp.float32)

    nll_acc = jnp.zeros((1, ch), jnp.float32)
    cnt_acc = jnp.zeros((1, ch), jnp.float32)
    fg_acc = jnp.zeros((C, ch), jnp.float32)

    # statically-unrolled strip-mine: big DMA block, bounded per-chunk vregs
    for k in range(n_chunks):
        lo = k * ch
        pred = pred_ref[:, lo:lo + ch].astype(jnp.float32)     # (C, ch)
        tgt = tgt_ref[:, lo:lo + ch].astype(jnp.float32)       # (C, ch)
        msk = mask_ref[:, lo:lo + ch].astype(jnp.float32)      # (1, ch)

        # ragged last tile: lanes with global pixel index >= H*W act "ignored"
        in_range = (j * t_total + lo + lane) < hw              # (1, ch)
        valid = (msk != 0.0) & in_range                        # (1, ch)
        pred = jnp.where(in_range, pred, 0.0)                  # keep softmax finite

        # argmax over classes (sublane axis), first-max wins (torch.argmax)
        tmax = jnp.max(tgt, axis=0, keepdims=True)
        labelf = jnp.min(jnp.where(tgt == tmax, rowf, float(C)),
                         axis=0, keepdims=True)
        fgb = (rowf == labelf) & valid                         # (C, ch) bool
        fg = fgb.astype(jnp.float32)

        # softmax / log-softmax over classes; one (1,ch) divide instead of (C,ch)
        m = jnp.max(pred, axis=0, keepdims=True)
        ex = jnp.exp(pred - m)
        s = jnp.sum(ex, axis=0, keepdims=True)
        inv = 1.0 / s
        prob = ex * inv
        logsm = (pred - m) - jnp.log(s)

        validf = valid.astype(jnp.float32)
        nll = -jnp.sum(fg * logsm, axis=0, keepdims=True)      # (1, ch)

        # pack: err >= 0; force the sign bit (== negate) and put fg in the LSB.
        # One f32 key per pixel/class: ascending sort == descending by error.
        err = jnp.abs(fg - prob) * validf
        bits = pltpu.bitcast(err, jnp.uint32) & jnp.uint32(0xFFFFFFFE)
        bits = bits | jnp.where(fgb, jnp.uint32(0x80000001),
                                jnp.uint32(0x80000000))
        packed_ref[:, lo:lo + ch] = pltpu.bitcast(bits, jnp.float32)

        nll_acc = nll_acc + nll
        cnt_acc = cnt_acc + validf
        fg_acc = fg_acc + fg

    # one reduction per tile; scalar broadcast into lane-dense accumulators
    ce_ref[...] += jnp.sum(nll_acc)
    cnt_ref[...] += jnp.sum(cnt_acc)
    gts_ref[...] += jnp.sum(fg_acc, axis=1, keepdims=True)     # (C, 1)


# ----------------------------------------------------------------------------
# Kernel 2: Lovasz reduction over globally sorted (descending-by-error) keys.
# For each class c: loss_c = dot(errors_sorted, lovasz_grad(fg_sorted)).
# fg / err are decoded from the packed key; the cumulative fg sum is a short
# prefix scan per 128/256-lane chunk with the carry flowing across chunks and
# (via VMEM scratch) across grid tiles.
# ----------------------------------------------------------------------------
def _lovasz_kernel(packed_ref, gts_ref, out_ref, cfg_carry, jprev,
                   *, ch, n_chunks):
    i = pl.program_id(0)
    C = packed_ref.shape[0]
    t_total = ch * n_chunks

    @pl.when(i == 0)
    def _():
        out_ref[...] = jnp.zeros_like(out_ref)
        cfg_carry[...] = jnp.zeros_like(cfg_carry)
        jprev[...] = jnp.zeros_like(jprev)

    gts = gts_ref[...]                                         # (C, 1)
    lane = lax.broadcasted_iota(jnp.int32, (C, ch), 1)
    is_lane0 = lane == 0
    scan_steps = []
    s = 1
    while s < ch:
        scan_steps.append((s, lane >= s))
        s *= 2

    carry_cfg = cfg_carry[...]                                 # (C, 1)
    carry_j = jprev[...]                                       # (C, 1)
    loss_acc = jnp.zeros((C, ch), jnp.float32)

    for k in range(n_chunks):
        lo = k * ch
        bits = pltpu.bitcast(packed_ref[:, lo:lo + ch], jnp.uint32)
        fg = jnp.where((bits & jnp.uint32(1)) != 0, 1.0, 0.0)           # (C, ch)
        nerr = pltpu.bitcast(bits & jnp.uint32(0xFFFFFFFE), jnp.float32)  # == -err

        # within-chunk inclusive prefix sum of fg along lanes (7-8 roll steps)
        csum = fg
        for sh, msk in scan_steps:
            csum = csum + jnp.where(msk, pltpu.roll(csum, shift=sh, axis=1), 0.0)
        cfg = csum + carry_cfg                                 # global cumulative fg

        idx = (lane + (i * t_total + lo + 1)).astype(jnp.float32)  # 1-based global
        union = gts + idx - cfg                                # >= 1, no div-by-0
        jacc = idx / union                                     # == 1-(gts-cfg)/union

        # lovasz gradient: jacc[p] - jacc[p-1] (carry across chunk boundaries)
        jsh = jnp.where(is_lane0, carry_j, pltpu.roll(jacc, shift=1, axis=1))
        loss_acc = loss_acc + nerr * (jacc - jsh)              # accumulates -err*grad

        carry_cfg = cfg[:, ch - 1:ch]
        carry_j = jacc[:, ch - 1:ch]

    out_ref[...] += jnp.sum(loss_acc, axis=1, keepdims=True)   # = -sum(err*grad)
    cfg_carry[...] = carry_cfg
    jprev[...] = carry_j


# ----------------------------------------------------------------------------
# Wrapper
# ----------------------------------------------------------------------------
@functools.partial(jax.jit, static_argnames=("l1",))
def hybird_v3_loss(pred, target, mask, l1: float = 1.0):
    B, C, H, W = pred.shape
    HW = H * W
    CH, NCH = _prep_tiles(HW, C)
    T = CH * NCH
    n_hw = -(-HW // T)               # cdiv
    Pp = B * n_hw * T                # padded global pixel count (kernel outputs only)

    # NCHW is already (B, C, HW)-contiguous: reshape only, no transpose / pad.
    pred3 = pred.reshape(B, C, HW)
    tgt3 = target.reshape(B, C, HW)
    mask3 = mask.reshape(B, 1, HW).astype(jnp.float32)

    packed, ce_p, cnt_p, gts_p = pl.pallas_call(
        functools.partial(_prep_kernel, hw=HW, ch=CH, n_chunks=NCH),
        out_shape=(
            jax.ShapeDtypeStruct((C, Pp), jnp.float32),      # packed -err / fg key
            jax.ShapeDtypeStruct((B, 1, 128), jnp.float32),  # per-b CE sum
            jax.ShapeDtypeStruct((B, 1, 128), jnp.float32),  # per-b valid count
            jax.ShapeDtypeStruct((B, C, 1), jnp.float32),    # per-b class counts
        ),
        grid=(B, n_hw),
        in_specs=[
            pl.BlockSpec((None, C, T), lambda b, j: (b, 0, j)),
            pl.BlockSpec((None, C, T), lambda b, j: (b, 0, j)),
            pl.BlockSpec((None, 1, T), lambda b, j: (b, 0, j)),
        ],
        out_specs=(
            pl.BlockSpec((C, T), lambda b, j: (0, b * n_hw + j)),
            pl.BlockSpec((None, 1, 128), lambda b, j: (b, 0, 0)),
            pl.BlockSpec((None, 1, 128), lambda b, j: (b, 0, 0)),
            pl.BlockSpec((None, C, 1), lambda b, j: (b, 0, 0)),
        ),
        compiler_params=pltpu.CompilerParams(
            dimension_semantics=("parallel", "arbitrary"),
            vmem_limit_bytes=32 * 1024 * 1024),
    )(pred3, tgt3, mask3)

    ce_loss = jnp.sum(ce_p[:, 0, 0]) / jnp.sum(cnt_p[:, 0, 0])
    gts = jnp.sum(gts_p, axis=0)                     # (C, 1)

    # TODO(synk): the global per-class descending sort has no clean Pallas TPU
    # equivalent; done with one lax.sort over the packed (err, fg-in-LSB) keys.
    packed_s = lax.sort(packed, dimension=1)

    CHL = min(CH, 256)               # divides T (CH is a pow2 multiple of 128)
    NCHL = T // CHL
    neg_per_class = pl.pallas_call(
        functools.partial(_lovasz_kernel, ch=CHL, n_chunks=NCHL),
        out_shape=jax.ShapeDtypeStruct((C, 1), jnp.float32),
        grid=(Pp // T,),
        in_specs=[
            pl.BlockSpec((C, T), lambda i: (0, i)),
            pl.BlockSpec((C, 1), lambda i: (0, 0)),
        ],
        out_specs=pl.BlockSpec((C, 1), lambda i: (0, 0)),
        scratch_shapes=[
            pltpu.VMEM((C, 1), jnp.float32),   # running cumsum(fg) carry
            pltpu.VMEM((C, 1), jnp.float32),   # previous chunk/tile last jaccard
        ],
        compiler_params=pltpu.CompilerParams(
            dimension_semantics=("arbitrary",),
            vmem_limit_bytes=32 * 1024 * 1024),
    )(packed_s, gts)

    per_class = -neg_per_class[:, 0]                 # single negate, in XLA
    present = gts[:, 0] > 0.0                        # classes="present"
    n_present = jnp.maximum(jnp.sum(present.astype(jnp.float32)), 1.0)
    lovasz = jnp.sum(jnp.where(present, per_class, 0.0)) / n_present

    return (ce_loss + l1 * lovasz) / (1.0 + l1)


# ----------------------------------------------------------------------------
# Pure-JAX reference (same math, no Pallas) for a sanity check.
# ----------------------------------------------------------------------------
def reference_loss(pred, target, mask, l1: float = 1.0):
    B, C, H, W = pred.shape
    p = jnp.transpose(pred, (0, 2, 3, 1)).reshape(-1, C).astype(jnp.float32)
    t = jnp.transpose(target, (0, 2, 3, 1)).reshape(-1, C).astype(jnp.float32)
    valid = (mask.reshape(-1) != 0)

    label = jnp.argmax(t, axis=1)
    logsm = jax.nn.log_softmax(p, axis=1)
    nll = -jnp.take_along_axis(logsm, label[:, None], axis=1)[:, 0]
    ce = jnp.sum(jnp.where(valid, nll, 0.0)) / jnp.sum(valid.astype(jnp.float32))

    prob = jax.nn.softmax(p, axis=1)
    vf = valid[:, None].astype(jnp.float32)
    fg = jax.nn.one_hot(label, C, dtype=jnp.float32) * vf
    err = jnp.abs(fg - prob) * vf

    neg_es, fgs = lax.sort((-err, fg), dimension=0, num_keys=1)
    errs = -neg_es
    gts = jnp.sum(fgs, axis=0, keepdims=True)
    cfg = jnp.cumsum(fgs, axis=0)
    idx = (jnp.arange(errs.shape[0], dtype=jnp.float32) + 1.0)[:, None]
    jacc = 1.0 - (gts - cfg) / (gts + idx - cfg)
    grad = jnp.concatenate([jacc[:1], jacc[1:] - jacc[:-1]], axis=0)
    loss_c = jnp.sum(errs * grad, axis=0)

    present = gts[0] > 0.0
    n_present = jnp.maximum(jnp.sum(present.astype(jnp.float32)), 1.0)
    lovasz = jnp.sum(jnp.where(present, loss_c, 0.0)) / n_present
    return (ce + l1 * lovasz) / (1.0 + l1)


if __name__ == "__main__":
    key = jax.random.PRNGKey(0)
    k1, k2, k3 = jax.random.split(key, 3)

    B, C, H, W = 2, 4, 16, 16
    pred = jax.random.normal(k1, (B, C, H, W), jnp.float32)
    labels = jax.random.randint(k2, (B, H, W), 0, C)
    target = jnp.transpose(jax.nn.one_hot(labels, C, dtype=jnp.float32),
                           (0, 3, 1, 2))                        # NCHW one-hot
    mask = (jax.random.uniform(k3, (B, H, W)) > 0.2).astype(jnp.float32)

    loss = hybird_v3_loss(pred, target, mask, l1=1.0)
    loss = jax.block_until_ready(loss)

    ref = reference_loss(pred, target, mask, l1=1.0)
    assert bool(jnp.isfinite(loss))
    assert bool(jnp.allclose(loss, ref, atol=2e-4, rtol=2e-4)), (float(loss), float(ref))

    print("KERNEL_OK")
</pallas_src>

<mosaic_0001>
module attributes {stable_mosaic.version = 11 : i64} {
  func.func @_prep_kernel(%arg0: i32, %arg1: i32, %arg2: memref<1x4x256xf32, #tpu.memory_space<vmem>>, %arg3: memref<1x4x256xf32, #tpu.memory_space<vmem>>, %arg4: memref<1x1x256xf32, #tpu.memory_space<vmem>>, %arg5: memref<4x256xf32, #tpu.memory_space<vmem>>, %arg6: memref<1x1x128xf32, #tpu.memory_space<vmem>>, %arg7: memref<1x1x128xf32, #tpu.memory_space<vmem>>, %arg8: memref<1x4x1xf32, #tpu.memory_space<vmem>>) attributes {dimension_semantics = [#tpu.dimension_semantics<parallel>, #tpu.dimension_semantics<arbitrary>], iteration_bounds = array<i64: 2, 1>, scalar_prefetch = 0 : i64, scratch_operands = 0 : i64, tpu.core_type = #tpu.core_type<tc>, window_params = [{transform_indices = @transform_0, window_bounds = array<i64: 1, 4, 256>}, {transform_indices = @transform_1, window_bounds = array<i64: 1, 4, 256>}, {transform_indices = @transform_2, window_bounds = array<i64: 1, 1, 256>}, {transform_indices = @transform_3, window_bounds = array<i64: 4, 256>}, {transform_indices = @transform_4, window_bounds = array<i64: 1, 1, 128>}, {transform_indices = @transform_5, window_bounds = array<i64: 1, 1, 128>}, {transform_indices = @transform_6, window_bounds = array<i64: 1, 4, 1>}]} {
    %c0_i32 = arith.constant 0 : i32
    %0 = arith.cmpi eq, %arg1, %c0_i32 : i32
    %1 = arith.extui %0 : i1 to i32
    %c0_i32_0 = arith.constant 0 : i32
    %2 = arith.cmpi ne, %1, %c0_i32_0 : i32
    scf.if %2 {
      %cst_46 = arith.constant 0.000000e+00 : f32
      %111 = vector.broadcast %cst_46 : f32 to vector<1x128xf32>
      %c0_47 = arith.constant 0 : index
      %c0_48 = arith.constant 0 : index
      %c0_49 = arith.constant 0 : index
      %112 = vector.load %arg6[%c0_47, %c0_48, %c0_49] : memref<1x1x128xf32, #tpu.memory_space<vmem>>, vector<1x1x128xf32>
      %113 = vector.shape_cast %112 : vector<1x1x128xf32> to vector<1x128xf32>
      %114 = vector.shape_cast %111 : vector<1x128xf32> to vector<1x1x128xf32>
      tpu.vector_store %arg6[%c0_47, %c0_48, %c0_49], %114 {strides = array<i32>} : memref<1x1x128xf32, #tpu.memory_space<vmem>>, vector<1x1x128xf32>,
      %cst_50 = arith.constant 0.000000e+00 : f32
      %115 = vector.broadcast %cst_50 : f32 to vector<1x128xf32>
      %c0_51 = arith.constant 0 : index
      %c0_52 = arith.constant 0 : index
      %c0_53 = arith.constant 0 : index
      %116 = vector.load %arg7[%c0_51, %c0_52, %c0_53] : memref<1x1x128xf32, #tpu.memory_space<vmem>>, vector<1x1x128xf32>
      %117 = vector.shape_cast %116 : vector<1x1x128xf32> to vector<1x128xf32>
      %118 = vector.shape_cast %115 : vector<1x128xf32> to vector<1x1x128xf32>
      tpu.vector_store %arg7[%c0_51, %c0_52, %c0_53], %118 {strides = array<i32>} : memref<1x1x128xf32, #tpu.memory_space<vmem>>, vector<1x1x128xf32>,
      %cst_54 = arith.constant 0.000000e+00 : f32
      %119 = vector.broadcast %cst_54 : f32 to vector<4x1xf32>
      %c0_55 = arith.constant 0 : index
      %c0_56 = arith.constant 0 : index
      %c0_57 = arith.constant 0 : index
      %120 = vector.load %arg8[%c0_55, %c0_56, %c0_57] : memref<1x4x1xf32, #tpu.memory_space<vmem>>, vector<1x4x1xf32>
      %121 = vector.shape_cast %120 : vector<1x4x1xf32> to vector<4x1xf32>
      %122 = vector.shape_cast %119 : vector<4x1xf32> to vector<1x4x1xf32>
      tpu.vector_store %arg8[%c0_55, %c0_56, %c0_57], %122 {strides = array<i32>} : memref<1x4x1xf32, #tpu.memory_space<vmem>>, vector<1x4x1xf32>,
    } else {
    }
    %3 = tpu.iota {dimensions = array<i32: 1>} : vector<1x256xi32>
    %4 = tpu.iota {dimensions = array<i32: 0>} : vector<4x256xi32>
    %5 = arith.sitofp %4 : vector<4x256xi32> to vector<4x256xf32>
    %cst = arith.constant 0.000000e+00 : f32
    %6 = vector.broadcast %cst : f32 to vector<1x256xf32>
    %cst_1 = arith.constant 0.000000e+00 : f32
    %7 = vector.broadcast %cst_1 : f32 to vector<1x256xf32>
    %cst_2 = arith.constant 0.000000e+00 : f32
    %8 = vector.broadcast %cst_2 : f32 to vector<4x256xf32>
    %c0 = arith.constant 0 : index
    %c0_3 = arith.constant 0 : index
    %c0_4 = arith.constant 0 : index
    %9 = vector.load %arg2[%c0, %c0_3, %c0_4] : memref<1x4x256xf32, #tpu.memory_space<vmem>>, vector<1x4x256xf32>
    %10 = vector.shape_cast %9 : vector<1x4x256xf32> to vector<4x256xf32>
    %c0_5 = arith.constant 0 : index
    %c0_6 = arith.constant 0 : index
    %c0_7 = arith.constant 0 : index
    %11 = vector.load %arg3[%c0_5, %c0_6, %c0_7] : memref<1x4x256xf32, #tpu.memory_space<vmem>>, vector<1x4x256xf32>
    %12 = vector.shape_cast %11 : vector<1x4x256xf32> to vector<4x256xf32>
    %c0_8 = arith.constant 0 : index
    %c0_9 = arith.constant 0 : index
    %c0_10 = arith.constant 0 : index
    %13 = vector.load %arg4[%c0_8, %c0_9, %c0_10] : memref<1x1x256xf32, #tpu.memory_space<vmem>>, vector<1x1x256xf32>
    %14 = vector.shape_cast %13 : vector<1x1x256xf32> to vector<1x256xf32>
    %c256_i32 = arith.constant 256 : i32
    %15 = arith.muli %arg1, %c256_i32 : i32
    %c0_i32_11 = arith.constant 0 : i32
    %16 = arith.addi %15, %c0_i32_11 : i32
    %17 = vector.broadcast %16 : i32 to vector<1x256xi32>
    %18 = arith.addi %17, %3 : vector<1x256xi32>
    %c256_i32_12 = arith.constant 256 : i32
    %19 = vector.broadcast %c256_i32_12 : i32 to vector<1x256xi32>
    %20 = arith.cmpi slt, %18, %19 : vector<1x256xi32>
    %cst_13 = arith.constant 0.000000e+00 : f32
    %21 = vector.broadcast %cst_13 : f32 to vector<1x256xf32>
    %22 = arith.cmpf one, %14, %21 : vector<1x256xf32>
    %23 = arith.andi %22, %20 : vector<1x256xi1>
    %cst_14 = arith.constant 0.000000e+00 : f32
    %24 = vector.shape_cast %20 : vector<1x256xi1> to vector<1x256xi1>
    %25 = vector.broadcast %24 : vector<1x256xi1> to vector<4x256xi1>
    %26 = vector.broadcast %cst_14 : f32 to vector<4x256xf32>
    %27 = arith.select %25, %10, %26 : vector<4x256xi1>, vector<4x256xf32>
    %cst_15 = arith.constant dense<0xFF800000> : vector<256xf32>
    %28 = vector.multi_reduction <maximumf>, %12, %cst_15 [0] : vector<4x256xf32> to vector<256xf32>
    %29 = vector.shape_cast %28 : vector<256xf32> to vector<1x256xf32>
    %30 = vector.broadcast %29 : vector<1x256xf32> to vector<4x256xf32>
    %31 = arith.cmpf oeq, %12, %30 : vector<4x256xf32>
    %cst_16 = arith.constant 4.000000e+00 : f32
    %32 = vector.broadcast %cst_16 : f32 to vector<4x256xf32>
    %33 = arith.select %31, %5, %32 : vector<4x256xi1>, vector<4x256xf32>
    %cst_17 = arith.constant dense<0x7F800000> : vector<256xf32>
    %34 = vector.multi_reduction <minimumf>, %33, %cst_17 [0] : vector<4x256xf32> to vector<256xf32>
    %35 = vector.shape_cast %34 : vector<256xf32> to vector<1x256xf32>
    %36 = vector.broadcast %35 : vector<1x256xf32> to vector<4x256xf32>
    %37 = arith.cmpf oeq, %5, %36 : vector<4x256xf32>
    %38 = vector.broadcast %23 : vector<1x256xi1> to vector<4x256xi1>
    %39 = arith.andi %37, %38 : vector<4x256xi1>
    %40 = arith.extui %39 : vector<4x256xi1> to vector<4x256xi32>
    %41 = arith.sitofp %40 : vector<4x256xi32> to vector<4x256xf32>
    %cst_18 = arith.constant dense<0xFF800000> : vector<256xf32>
    %42 = vector.multi_reduction <maximumf>, %27, %cst_18 [0] : vector<4x256xf32> to vector<256xf32>
    %43 = vector.shape_cast %42 : vector<256xf32> to vector<1x256xf32>
    %44 = vector.broadcast %43 : vector<1x256xf32> to vector<4x256xf32>
    %45 = arith.subf %27, %44 : vector<4x256xf32>
    %46 = math.exp %45 : vector<4x256xf32>
    %cst_19 = arith.constant dense<0.000000e+00> : vector<256xf32>
    %47 = vector.multi_reduction <add>, %46, %cst_19 [0] : vector<4x256xf32> to vector<256xf32>
    %48 = vector.shape_cast %47 : vector<256xf32> to vector<1x256xf32>
    %cst_20 = arith.constant 1.000000e+00 : f32
    %49 = vector.broadcast %cst_20 : f32 to vector<1x256xf32>
    %50 = arith.divf %49, %48 : vector<1x256xf32>
    %51 = vector.broadcast %50 : vector<1x256xf32> to vector<4x256xf32>
    %52 = arith.mulf %46, %51 : vector<4x256xf32>
    %53 = vector.broadcast %43 : vector<1x256xf32> to vector<4x256xf32>
    %54 = arith.subf %27, %53 : vector<4x256xf32>
    %55 = math.log %48 : vector<1x256xf32>
    %56 = vector.broadcast %55 : vector<1x256xf32> to vector<4x256xf32>
    %57 = arith.subf %54, %56 : vector<4x256xf32>
    %58 = arith.extui %23 : vector<1x256xi1> to vector<1x256xi32>
    %59 = arith.sitofp %58 : vector<1x256xi32> to vector<1x256xf32>
    %60 = arith.mulf %41, %57 : vector<4x256xf32>
    %cst_21 = arith.constant dense<0.000000e+00> : vector<256xf32>
    %61 = vector.multi_reduction <add>, %60, %cst_21 [0] : vector<4x256xf32> to vector<256xf32>
    %62 = vector.shape_cast %61 : vector<256xf32> to vector<1x256xf32>
    %cst_22 = arith.constant 0.000000e+00 : f32
    %63 = vector.broadcast %cst_22 : f32 to vector<1x256xf32>
    %64 = arith.subf %63, %62 : vector<1x256xf32>
    %65 = arith.subf %41, %52 : vector<4x256xf32>
    %66 = math.absf %65 : vector<4x256xf32>
    %67 = vector.broadcast %59 : vector<1x256xf32> to vector<4x256xf32>
    %68 = arith.mulf %66, %67 : vector<4x256xf32>
    %69 = tpu.bitcast %68 : vector<4x256xf32> -> vector<4x256xi32>
    %c-2_i32 = arith.constant -2 : i32
    %70 = vector.broadcast %c-2_i32 : i32 to vector<4x256xi32>
    %71 = arith.andi %69, %70 : vector<4x256xi32>
    %c-2147483647_i32 = arith.constant -2147483647 : i32
    %c-2147483648_i32 = arith.constant -2147483648 : i32
    %72 = vector.broadcast %c-2147483647_i32 : i32 to vector<4x256xi32>
    %73 = vector.broadcast %c-2147483648_i32 : i32 to vector<4x256xi32>
    %74 = arith.select %39, %72, %73 : vector<4x256xi1>, vector<4x256xi32>
    %75 = arith.ori %71, %74 : vector<4x256xi32>
    %76 = tpu.bitcast %75 : vector<4x256xi32> -> vector<4x256xf32>
    %c0_23 = arith.constant 0 : index
    %c0_24 = arith.constant 0 : index
    %77 = vector.load %arg5[%c0_23, %c0_24] : memref<4x256xf32, #tpu.memory_space<vmem>>, vector<4x256xf32>
    tpu.vector_store %arg5[%c0_23, %c0_24], %76 {strides = array<i32>} : memref<4x256xf32, #tpu.memory_space<vmem>>, vector<4x256xf32>,
    %78 = arith.addf %6, %64 : vector<1x256xf32>
    %79 = arith.addf %7, %59 : vector<1x256xf32>
    %80 = arith.addf %8, %41 : vector<4x256xf32>
    %c0_25 = arith.constant 0 : index
    %c0_26 = arith.constant 0 : index
    %c0_27 = arith.constant 0 : index
    %81 = vector.load %arg6[%c0_25, %c0_26, %c0_27] : memref<1x1x128xf32, #tpu.memory_space<vmem>>, vector<1x1x128xf32>
    %82 = vector.shape_cast %81 : vector<1x1x128xf32> to vector<1x128xf32>
    %83 = vector.shape_cast %78 : vector<1x256xf32> to vector<1x1x256xf32>
    %cst_28 = arith.constant dense<0.000000e+00> : vector<1xf32>
    %84 = vector.multi_reduction <add>, %83, %cst_28 [1, 2] : vector<1x1x256xf32> to vector<1xf32>
    %85 = vector.shape_cast %84 : vector<1xf32> to vector<1x1x1xf32>
    %86 = vector.extract %85[0, 0, 0] : f32 from vector<1x1x1xf32>
    %87 = vector.broadcast %86 : f32 to vector<1x128xf32>
    %88 = arith.addf %82, %87 : vector<1x128xf32>
    %c0_29 = arith.constant 0 : index
    %c0_30 = arith.constant 0 : index
    %c0_31 = arith.constant 0 : index
    %89 = vector.load %arg6[%c0_29, %c0_30, %c0_31] : memref<1x1x128xf32, #tpu.memory_space<vmem>>, vector<1x1x128xf32>
    %90 = vector.shape_cast %89 : vector<1x1x128xf32> to vector<1x128xf32>
    %91 = vector.shape_cast %88 : vector<1x128xf32> to vector<1x1x128xf32>
    tpu.vector_store %arg6[%c0_29, %c0_30, %c0_31], %91 {strides = array<i32>} : memref<1x1x128xf32, #tpu.memory_space<vmem>>, vector<1x1x128xf32>,
    %c0_32 = arith.constant 0 : index
    %c0_33 = arith.constant 0 : index
    %c0_34 = arith.constant 0 : index
    %92 = vector.load %arg7[%c0_32, %c0_33, %c0_34] : memref<1x1x128xf32, #tpu.memory_space<vmem>>, vector<1x1x128xf32>
    %93 = vector.shape_cast %92 : vector<1x1x128xf32> to vector<1x128xf32>
    %94 = vector.shape_cast %79 : vector<1x256xf32> to vector<1x1x256xf32>
    %cst_35 = arith.constant dense<0.000000e+00> : vector<1xf32>
    %95 = vector.multi_reduction <add>, %94, %cst_35 [1, 2] : vector<1x1x256xf32> to vector<1xf32>
    %96 = vector.shape_cast %95 : vector<1xf32> to vector<1x1x1xf32>
    %97 = vector.extract %96[0, 0, 0] : f32 from vector<1x1x1xf32>
    %98 = vector.broadcast %97 : f32 to vector<1x128xf32>
    %99 = arith.addf %93, %98 : vector<1x128xf32>
    %c0_36 = arith.constant 0 : index
    %c0_37 = arith.constant 0 : index
    %c0_38 = arith.constant 0 : index
    %100 = vector.load %arg7[%c0_36, %c0_37, %c0_38] : memref<1x1x128xf32, #tpu.memory_space<vmem>>, vector<1x1x128xf32>
    %101 = vector.shape_cast %100 : vector<1x1x128xf32> to vector<1x128xf32>
    %102 = vector.shape_cast %99 : vector<1x128xf32> to vector<1x1x128xf32>
    tpu.vector_store %arg7[%c0_36, %c0_37, %c0_38], %102 {strides = array<i32>} : memref<1x1x128xf32, #tpu.memory_space<vmem>>, vector<1x1x128xf32>,
    %c0_39 = arith.constant 0 : index
    %c0_40 = arith.constant 0 : index
    %c0_41 = arith.constant 0 : index
    %103 = vector.load %arg8[%c0_39, %c0_40, %c0_41] : memref<1x4x1xf32, #tpu.memory_space<vmem>>, vector<1x4x1xf32>
    %104 = vector.shape_cast %103 : vector<1x4x1xf32> to vector<4x1xf32>
    %cst_42 = arith.constant dense<0.000000e+00> : vector<4xf32>
    %105 = vector.multi_reduction <add>, %80, %cst_42 [1] : vector<4x256xf32> to vector<4xf32>
    %106 = vector.shape_cast %105 : vector<4xf32> to vector<4x1xf32>
    %107 = arith.addf %104, %106 : vector<4x1xf32>
    %c0_43 = arith.constant 0 : index
    %c0_44 = arith.constant 0 : index
    %c0_45 = arith.constant 0 : index
    %108 = vector.load %arg8[%c0_43, %c0_44, %c0_45] : memref<1x4x1xf32, #tpu.memory_space<vmem>>, vector<1x4x1xf32>
    %109 = vector.shape_cast %108 : vector<1x4x1xf32> to vector<4x1xf32>
    %110 = vector.shape_cast %107 : vector<4x1xf32> to vector<1x4x1xf32>
    tpu.vector_store %arg8[%c0_43, %c0_44, %c0_45], %110 {strides = array<i32>} : memref<1x4x1xf32, #tpu.memory_space<vmem>>, vector<1x4x1xf32>,
    return
  }
  func.func @transform_0(%arg0: i32, %arg1: i32) -> (i32, i32, i32) {
    %c0_i32 = arith.constant 0 : i32
    %c0_i32_0 = arith.constant 0 : i32
    return %arg0, %c0_i32, %arg1 : i32, i32, i32
  }
  func.func @transform_1(%arg0: i32, %arg1: i32) -> (i32, i32, i32) {
    %c0_i32 = arith.constant 0 : i32
    %c0_i32_0 = arith.constant 0 : i32
    return %arg0, %c0_i32, %arg1 : i32, i32, i32
  }
  func.func @transform_2(%arg0: i32, %arg1: i32) -> (i32, i32, i32) {
    %c0_i32 = arith.constant 0 : i32
    %c0_i32_0 = arith.constant 0 : i32
    return %arg0, %c0_i32, %arg1 : i32, i32, i32
  }
  func.func @transform_3(%arg0: i32, %arg1: i32) -> (i32, i32) {
    %c1_i32 = arith.constant 1 : i32
    %0 = arith.muli %arg0, %c1_i32 : i32
    %1 = arith.addi %0, %arg1 : i32
    %c0_i32 = arith.constant 0 : i32
    %c0_i32_0 = arith.constant 0 : i32
    return %c0_i32, %1 : i32, i32
  }
  func.func @transform_4(%arg0: i32, %arg1: i32) -> (i32, i32, i32) {
    %c0_i32 = arith.constant 0 : i32
    %c0_i32_0 = arith.constant 0 : i32
    %c0_i32_1 = arith.constant 0 : i32
    return %arg0, %c0_i32, %c0_i32_0 : i32, i32, i32
  }
  func.func @transform_5(%arg0: i32, %arg1: i32) -> (i32, i32, i32) {
    %c0_i32 = arith.constant 0 : i32
    %c0_i32_0 = arith.constant 0 : i32
    %c0_i32_1 = arith.constant 0 : i32
    return %arg0, %c0_i32, %c0_i32_0 : i32, i32, i32
  }
  func.func @transform_6(%arg0: i32, %arg1: i32) -> (i32, i32, i32) {
    %c0_i32 = arith.constant 0 : i32
    %c0_i32_0 = arith.constant 0 : i32
    %c0_i32_1 = arith.constant 0 : i32
    return %arg0, %c0_i32, %c0_i32_0 : i32, i32, i32
  }
}

module attributes {stable_mosaic.version = 11 : i64} {
  func.func @_lovasz_kernel(%arg0: i32, %arg1: memref<4x256xf32, #tpu.memory_space<vmem>>, %arg2: memref<4x1xf32, #tpu.memory_space<vmem>>, %arg3: memref<4x1xf32, #tpu.memory_space<vmem>>, %arg4: memref<4x1xf32, #tpu.memory_space<vmem>>, %arg5: memref<4x1xf32, #tpu.memory_space<vmem>>) attributes {dimension_semantics = [#tpu.dimension_semantics<arbitrary>], iteration_bounds = array<i64: 2>, scalar_prefetch = 0 : i64, scratch_operands = 2 : i64, tpu.core_type = #tpu.core_type<tc>, window_params = [{transform_indices = @transform_0, window_bounds = array<i64: 4, 256>}, {pipeline_mode = #tpu.pipeline_mode<synchronous>, transform_indices = @transform_1, window_bounds = array<i64: 4, 1>}, {pipeline_mode = #tpu.pipeline_mode<synchronous>, transform_indices = @transform_2, window_bounds = array<i64: 4, 1>}]} {
    %c0_i32 = arith.constant 0 : i32
    %0 = arith.cmpi eq, %arg0, %c0_i32 : i32
    %1 = arith.extui %0 : i1 to i32
    %c0_i32_0 = arith.constant 0 : i32
    %2 = arith.cmpi ne, %1, %c0_i32_0 : i32
    scf.if %2 {
      %cst_41 = arith.constant 0.000000e+00 : f32
      %98 = vector.broadcast %cst_41 : f32 to vector<4x1xf32>
      %c0_42 = arith.constant 0 : index
      %c0_43 = arith.constant 0 : index
      %99 = vector.load %arg3[%c0_42, %c0_43] : memref<4x1xf32, #tpu.memory_space<vmem>>, vector<4x1xf32>
      tpu.vector_store %arg3[%c0_42, %c0_43], %98 {strides = array<i32>} : memref<4x1xf32, #tpu.memory_space<vmem>>, vector<4x1xf32>,
      %cst_44 = arith.constant 0.000000e+00 : f32
      %100 = vector.broadcast %cst_44 : f32 to vector<4x1xf32>
      %c0_45 = arith.constant 0 : index
      %c0_46 = arith.constant 0 : index
      %101 = vector.load %arg4[%c0_45, %c0_46] : memref<4x1xf32, #tpu.memory_space<vmem>>, vector<4x1xf32>
      tpu.vector_store %arg4[%c0_45, %c0_46], %100 {strides = array<i32>} : memref<4x1xf32, #tpu.memory_space<vmem>>, vector<4x1xf32>,
      %cst_47 = arith.constant 0.000000e+00 : f32
      %102 = vector.broadcast %cst_47 : f32 to vector<4x1xf32>
      %c0_48 = arith.constant 0 : index
      %c0_49 = arith.constant 0 : index
      %103 = vector.load %arg5[%c0_48, %c0_49] : memref<4x1xf32, #tpu.memory_space<vmem>>, vector<4x1xf32>
      tpu.vector_store %arg5[%c0_48, %c0_49], %102 {strides = array<i32>} : memref<4x1xf32, #tpu.memory_space<vmem>>, vector<4x1xf32>,
    } else {
    }
    %c0 = arith.constant 0 : index
    %c0_1 = arith.constant 0 : index
    %3 = vector.load %arg2[%c0, %c0_1] : memref<4x1xf32, #tpu.memory_space<vmem>>, vector<4x1xf32>
    %4 = tpu.iota {dimensions = array<i32: 1>} : vector<4x256xi32>
    %c0_i32_2 = arith.constant 0 : i32
    %5 = vector.broadcast %c0_i32_2 : i32 to vector<4x256xi32>
    %6 = arith.cmpi eq, %4, %5 : vector<4x256xi32>
    %c1_i32 = arith.constant 1 : i32
    %7 = vector.broadcast %c1_i32 : i32 to vector<4x256xi32>
    %8 = arith.cmpi sge, %4, %7 : vector<4x256xi32>
    %c2_i32 = arith.constant 2 : i32
    %9 = vector.broadcast %c2_i32 : i32 to vector<4x256xi32>
    %10 = arith.cmpi sge, %4, %9 : vector<4x256xi32>
    %c4_i32 = arith.constant 4 : i32
    %11 = vector.broadcast %c4_i32 : i32 to vector<4x256xi32>
    %12 = arith.cmpi sge, %4, %11 : vector<4x256xi32>
    %c8_i32 = arith.constant 8 : i32
    %13 = vector.broadcast %c8_i32 : i32 to vector<4x256xi32>
    %14 = arith.cmpi sge, %4, %13 : vector<4x256xi32>
    %c16_i32 = arith.constant 16 : i32
    %15 = vector.broadcast %c16_i32 : i32 to vector<4x256xi32>
    %16 = arith.cmpi sge, %4, %15 : vector<4x256xi32>
    %c32_i32 = arith.constant 32 : i32
    %17 = vector.broadcast %c32_i32 : i32 to vector<4x256xi32>
    %18 = arith.cmpi sge, %4, %17 : vector<4x256xi32>
    %c64_i32 = arith.constant 64 : i32
    %19 = vector.broadcast %c64_i32 : i32 to vector<4x256xi32>
    %20 = arith.cmpi sge, %4, %19 : vector<4x256xi32>
    %c128_i32 = arith.constant 128 : i32
    %21 = vector.broadcast %c128_i32 : i32 to vector<4x256xi32>
    %22 = arith.cmpi sge, %4, %21 : vector<4x256xi32>
    %c0_3 = arith.constant 0 : index
    %c0_4 = arith.constant 0 : index
    %23 = vector.load %arg4[%c0_3, %c0_4] : memref<4x1xf32, #tpu.memory_space<vmem>>, vector<4x1xf32>
    %c0_5 = arith.constant 0 : index
    %c0_6 = arith.constant 0 : index
    %24 = vector.load %arg5[%c0_5, %c0_6] : memref<4x1xf32, #tpu.memory_space<vmem>>, vector<4x1xf32>
    %cst = arith.constant 0.000000e+00 : f32
    %25 = vector.broadcast %cst : f32 to vector<4x256xf32>
    %c0_7 = arith.constant 0 : index
    %c0_8 = arith.constant 0 : index
    %26 = vector.load %arg1[%c0_7, %c0_8] : memref<4x256xf32, #tpu.memory_space<vmem>>, vector<4x256xf32>
    %27 = tpu.bitcast %26 : vector<4x256xf32> -> vector<4x256xi32>
    %c1_i32_9 = arith.constant 1 : i32
    %28 = vector.broadcast %c1_i32_9 : i32 to vector<4x256xi32>
    %29 = arith.andi %27, %28 : vector<4x256xi32>
    %c0_i32_10 = arith.constant 0 : i32
    %30 = vector.broadcast %c0_i32_10 : i32 to vector<4x256xi32>
    %31 = arith.cmpi ne, %29, %30 : vector<4x256xi32>
    %cst_11 = arith.constant 1.000000e+00 : f32
    %cst_12 = arith.constant 0.000000e+00 : f32
    %32 = vector.broadcast %cst_11 : f32 to vector<4x256xf32>
    %33 = vector.broadcast %cst_12 : f32 to vector<4x256xf32>
    %34 = arith.select %31, %32, %33 : vector<4x256xi1>, vector<4x256xf32>
    %c-2_i32 = arith.constant -2 : i32
    %35 = vector.broadcast %c-2_i32 : i32 to vector<4x256xi32>
    %36 = arith.andi %27, %35 : vector<4x256xi32>
    %37 = tpu.bitcast %36 : vector<4x256xi32> -> vector<4x256xf32>
    %c1_i32_13 = arith.constant 1 : i32
    %38 = tpu.dynamic_rotate %34 by %c1_i32_13 dim 1 : vector<4x256xf32>, i32 -> vector<4x256xf32>
    %cst_14 = arith.constant 0.000000e+00 : f32
    %39 = vector.broadcast %cst_14 : f32 to vector<4x256xf32>
    %40 = arith.select %8, %38, %39 : vector<4x256xi1>, vector<4x256xf32>
    %41 = arith.addf %34, %40 : vector<4x256xf32>
    %c2_i32_15 = arith.constant 2 : i32
    %42 = tpu.dynamic_rotate %41 by %c2_i32_15 dim 1 : vector<4x256xf32>, i32 -> vector<4x256xf32>
    %cst_16 = arith.constant 0.000000e+00 : f32
    %43 = vector.broadcast %cst_16 : f32 to vector<4x256xf32>
    %44 = arith.select %10, %42, %43 : vector<4x256xi1>, vector<4x256xf32>
    %45 = arith.addf %41, %44 : vector<4x256xf32>
    %c4_i32_17 = arith.constant 4 : i32
    %46 = tpu.dynamic_rotate %45 by %c4_i32_17 dim 1 : vector<4x256xf32>, i32 -> vector<4x256xf32>
    %cst_18 = arith.constant 0.000000e+00 : f32
    %47 = vector.broadcast %cst_18 : f32 to vector<4x256xf32>
    %48 = arith.select %12, %46, %47 : vector<4x256xi1>, vector<4x256xf32>
    %49 = arith.addf %45, %48 : vector<4x256xf32>
    %c8_i32_19 = arith.constant 8 : i32
    %50 = tpu.dynamic_rotate %49 by %c8_i32_19 dim 1 : vector<4x256xf32>, i32 -> vector<4x256xf32>
    %cst_20 = arith.constant 0.000000e+00 : f32
    %51 = vector.broadcast %cst_20 : f32 to vector<4x256xf32>
    %52 = arith.select %14, %50, %51 : vector<4x256xi1>, vector<4x256xf32>
    %53 = arith.addf %49, %52 : vector<4x256xf32>
    %c16_i32_21 = arith.constant 16 : i32
    %54 = tpu.dynamic_rotate %53 by %c16_i32_21 dim 1 : vector<4x256xf32>, i32 -> vector<4x256xf32>
    %cst_22 = arith.constant 0.000000e+00 : f32
    %55 = vector.broadcast %cst_22 : f32 to vector<4x256xf32>
    %56 = arith.select %16, %54, %55 : vector<4x256xi1>, vector<4x256xf32>
    %57 = arith.addf %53, %56 : vector<4x256xf32>
    %c32_i32_23 = arith.constant 32 : i32
    %58 = tpu.dynamic_rotate %57 by %c32_i32_23 dim 1 : vector<4x256xf32>, i32 -> vector<4x256xf32>
    %cst_24 = arith.constant 0.000000e+00 : f32
    %59 = vector.broadcast %cst_24 : f32 to vector<4x256xf32>
    %60 = arith.select %18, %58, %59 : vector<4x256xi1>, vector<4x256xf32>
    %61 = arith.addf %57, %60 : vector<4x256xf32>
    %c64_i32_25 = arith.constant 64 : i32
    %62 = tpu.dynamic_rotate %61 by %c64_i32_25 dim 1 : vector<4x256xf32>, i32 -> vector<4x256xf32>
    %cst_26 = arith.constant 0.000000e+00 : f32
    %63 = vector.broadcast %cst_26 : f32 to vector<4x256xf32>
    %64 = arith.select %20, %62, %63 : vector<4x256xi1>, vector<4x256xf32>
    %65 = arith.addf %61, %64 : vector<4x256xf32>
    %c128_i32_27 = arith.constant 128 : i32
    %66 = tpu.dynamic_rotate %65 by %c128_i32_27 dim 1 : vector<4x256xf32>, i32 -> vector<4x256xf32>
    %cst_28 = arith.constant 0.000000e+00 : f32
    %67 = vector.broadcast %cst_28 : f32 to vector<4x256xf32>
    %68 = arith.select %22, %66, %67 : vector<4x256xi1>, vector<4x256xf32>
    %69 = arith.addf %65, %68 : vector<4x256xf32>
    %70 = vector.broadcast %23 : vector<4x1xf32> to vector<4x256xf32>
    %71 = arith.addf %69, %70 : vector<4x256xf32>
    %c256_i32 = arith.constant 256 : i32
    %72 = arith.muli %arg0, %c256_i32 : i32
    %c0_i32_29 = arith.constant 0 : i32
    %73 = arith.addi %72, %c0_i32_29 : i32
    %c1_i32_30 = arith.constant 1 : i32
    %74 = arith.addi %73, %c1_i32_30 : i32
    %75 = vector.broadcast %74 : i32 to vector<4x256xi32>
    %76 = arith.addi %4, %75 : vector<4x256xi32>
    %77 = arith.sitofp %76 : vector<4x256xi32> to vector<4x256xf32>
    %78 = vector.broadcast %3 : vector<4x1xf32> to vector<4x256xf32>
    %79 = arith.addf %78, %77 : vector<4x256xf32>
    %80 = arith.subf %79, %71 : vector<4x256xf32>
    %81 = arith.divf %77, %80 : vector<4x256xf32>
    %c1_i32_31 = arith.constant 1 : i32
    %82 = tpu.dynamic_rotate %81 by %c1_i32_31 dim 1 : vector<4x256xf32>, i32 -> vector<4x256xf32>
    %83 = vector.shape_cast %24 : vector<4x1xf32> to vector<4x1xf32>
    %84 = vector.broadcast %83 : vector<4x1xf32> to vector<4x256xf32>
    %85 = arith.select %6, %84, %82 : vector<4x256xi1>, vector<4x256xf32>
    %86 = arith.subf %81, %85 : vector<4x256xf32>
    %87 = arith.mulf %37, %86 : vector<4x256xf32>
    %88 = arith.addf %25, %87 : vector<4x256xf32>
    %89 = vector.extract_strided_slice %71 {offsets = [0, 255], sizes = [4, 1], strides = [1, 1]} : vector<4x256xf32> to vector<4x1xf32>
    %90 = vector.extract_strided_slice %81 {offsets = [0, 255], sizes = [4, 1], strides = [1, 1]} : vector<4x256xf32> to vector<4x1xf32>
    %c0_32 = arith.constant 0 : index
    %c0_33 = arith.constant 0 : index
    %91 = vector.load %arg3[%c0_32, %c0_33] : memref<4x1xf32, #tpu.memory_space<vmem>>, vector<4x1xf32>
    %cst_34 = arith.constant dense<0.000000e+00> : vector<4xf32>
    %92 = vector.multi_reduction <add>, %88, %cst_34 [1] : vector<4x256xf32> to vector<4xf32>
    %93 = vector.shape_cast %92 : vector<4xf32> to vector<4x1xf32>
    %94 = arith.addf %91, %93 : vector<4x1xf32>
    %c0_35 = arith.constant 0 : index
    %c0_36 = arith.constant 0 : index
    %95 = vector.load %arg3[%c0_35, %c0_36] : memref<4x1xf32, #tpu.memory_space<vmem>>, vector<4x1xf32>
    tpu.vector_store %arg3[%c0_35, %c0_36], %94 {strides = array<i32>} : memref<4x1xf32, #tpu.memory_space<vmem>>, vector<4x1xf32>,
    %c0_37 = arith.constant 0 : index
    %c0_38 = arith.constant 0 : index
    %96 = vector.load %arg4[%c0_37, %c0_38] : memref<4x1xf32, #tpu.memory_space<vmem>>, vector<4x1xf32>
    tpu.vector_store %arg4[%c0_37, %c0_38], %89 {strides = array<i32>} : memref<4x1xf32, #tpu.memory_space<vmem>>, vector<4x1xf32>,
    %c0_39 = arith.constant 0 : index
    %c0_40 = arith.constant 0 : index
    %97 = vector.load %arg5[%c0_39, %c0_40] : memref<4x1xf32, #tpu.memory_space<vmem>>, vector<4x1xf32>
    tpu.vector_store %arg5[%c0_39, %c0_40], %90 {strides = array<i32>} : memref<4x1xf32, #tpu.memory_space<vmem>>, vector<4x1xf32>,
    return
  }
  func.func @transform_0(%arg0: i32) -> (i32, i32) {
    %c0_i32 = arith.constant 0 : i32
    %c0_i32_0 = arith.constant 0 : i32
    return %c0_i32, %arg0 : i32, i32
  }
  func.func @transform_1(%arg0: i32) -> (i32, i32) {
    %c0_i32 = arith.constant 0 : i32
    %c0_i32_0 = arith.constant 0 : i32
    %c0_i32_1 = arith.constant 0 : i32
    return %c0_i32, %c0_i32_0 : i32, i32
  }
  func.func @transform_2(%arg0: i32) -> (i32, i32) {
    %c0_i32 = arith.constant 0 : i32
    %c0_i32_0 = arith.constant 0 : i32
    %c0_i32_1 = arith.constant 0 : i32
    return %c0_i32, %c0_i32_0 : i32, i32
  }
}

</mosaic_0001>

<llo_original>
// kernel: hybird_v3_loss.2
$region0: #{hybird_v3_loss.2}
  #allocation0 [shape = 'u32[]', space=smem, size = 0x4, offset = 0x4, fixed_abs, tag = 'smem constant byte address 0x4 - core index']
  #allocation1 [shape = 'u32[72,128]{1,0:T(1,128)}', space=vmem, size = 0x9000, scoped, tag = 'internal scratch']
  %s0 = inlined_call_operand.vmem [shape: f32[2,4,256], index: 0, kind: input, shape index: {}]
  %s1 = inlined_call_operand.vmem [shape: f32[2,4,256], index: 1, kind: input, shape index: {}]
  %s2 = inlined_call_operand.vmem [shape: f32[2,1,256], index: 2, kind: input, shape index: {}]
  %s3 = inlined_call_operand.vmem [shape: f32[4,512], index: 3, kind: output, shape index: {0}]
  %s4 = inlined_call_operand.vmem [shape: f32[2,1,128], index: 4, kind: output, shape index: {1}]
  %s5 = inlined_call_operand.vmem [shape: f32[2,1,128], index: 5, kind: output, shape index: {2}]
  %s6 = inlined_call_operand.vmem [shape: f32[2,4,1], index: 6, kind: output, shape index: {3}]
  %7 = xla_tuple %s3, %s4, %s5, %s6
  %s8 = sld [smem:[#allocation0]]
  $region73: #{hybird_v3_loss.2} parent=0
    _
  %s10 = ssub.s32 1, %s8
  %s11 = scalar_select 0, %s10, %s8
  loop: start=0, step=1, limit=4
  $region2: #{hybird_v3_loss.2} parent=0 // loop_pre_header
    _
  $region3: #{hybird_v3_loss.2} parent=0 // loop_header
    %s13 = sphi 0, %s17
    %p14 = scmp.ge.s32.totalorder %s13, 4
    %s20 = sphi 0, %s32
    %s21 = sphi 0, %s28
    %s22 = sphi 0, %s20
    %s23 = sphi 0, %s21
    %s24 = sphi 0, %s22
    %s25 = sphi 0, %s23
    %s37 = sphi 0, %s39
    %s40 = sphi 0, %s37
    %s41 = sphi 0, %s40
    %s57 = sphi 0, %s41
    %s65 = sphi 0, %s67
    %s68 = sphi 0, %s65
    %s69 = sphi 0, %s68
    %s85 = sphi 0, %s69
    %s93 = sphi 0, %s95
    %s96 = sphi 0, %s93
    %s97 = sphi 0, %s96
    %s113 = sphi 0, %s97
    %s121 = sphi 0, %s123
    %s124 = sphi 0, %s121
    %s125 = sphi 0, %s124
    %s141 = sphi 0, %s125
    %s147 = sphi 0, %s149
    %s150 = sphi 0, %s147
    %s151 = sphi 0, %s150
    %s167 = sphi 0, %s151
    %s173 = sphi 0, %s175
    %s176 = sphi 0, %s173
    %s177 = sphi 0, %s176
    %s193 = sphi 0, %s177
    %s199 = sphi 0, %s201
    %s202 = sphi 0, %s199
    %s203 = sphi 0, %s202
    %s219 = sphi 0, %s203
  $region4: #{hybird_v3_loss.2} parent=0 // loop_header_branch
    %16 = sbr.rel (%p14) target = $region8
  $region5: #{hybird_v3_loss.2} parent=0 // loop_body
    %s18 = ssub.s32 %s13, 1
    %s19 = ssub.s32 %s13, 2
    %s26 = sadd.s32 1, %s21
    %p27 = scmp.ge.s32.totalorder %s26, 1
    %s28 = scalar_select %p27, 0, %s26
    %s29 = sadd.s32 1, %s20
    %s30 = scalar_select %p27, %s29, %s20
    %p31 = scmp.ge.s32.totalorder %s30, 2
    %s32 = scalar_select %p31, 0, %s30
    %s33 = ssub.s32 %s20, %s32
    %s34 = ssub.s32 %s21, %s28
    %s35 = sor.u32 %s33, %s34
    %p36 = scmp.eq.s32.totalorder %s35, 0
    %s38 = sadd.s32 %s37, 1
    %s39 = scalar_select %p36, %s37, %s38
    %p42 = pneg %p36
    %p43 = scmp.eq.s32.totalorder %s13, 1
    %p44 = por %p42, %p43
    %p45 = scmp.ne.s32.totalorder %s37, %s40
    %p46 = scmp.eq.s32.totalorder %s13, 0
    %p47 = por %p45, %p46
    %p48 = scmp.ne.s32.totalorder %s37, %s40
    %p49 = scmp.eq.s32.totalorder %s18, 1
    %p50 = por %p48, %p49
    %p51 = scmp.ne.s32.totalorder %s40, %s41
    %p52 = scmp.eq.s32.totalorder %s18, 0
    %p53 = por %p51, %p52
    %p54 = scmp.ne.s32.totalorder %s40, %s41
    %p55 = scmp.eq.s32.totalorder %s19, 1
    %p56 = por %p54, %p55
    %p58 = scmp.ne.s32.totalorder %s41, %s57
    %p59 = scmp.eq.s32.totalorder %s19, 0
    %p60 = por %p58, %p59
    %s61 = ssub.s32 %s20, %s32
    %s62 = ssub.s32 %s21, %s28
    %s63 = sor.u32 %s61, %s62
    %p64 = scmp.eq.s32.totalorder %s63, 0
    %s66 = sadd.s32 %s65, 1
    %s67 = scalar_select %p64, %s65, %s66
    %p70 = pneg %p64
    %p71 = scmp.eq.s32.totalorder %s13, 1
    %p72 = por %p70, %p71
    %p73 = scmp.ne.s32.totalorder %s65, %s68
    %p74 = scmp.eq.s32.totalorder %s13, 0
    %p75 = por %p73, %p74
    %p76 = scmp.ne.s32.totalorder %s65, %s68
    %p77 = scmp.eq.s32.totalorder %s18, 1
    %p78 = por %p76, %p77
    %p79 = scmp.ne.s32.totalorder %s68, %s69
    %p80 = scmp.eq.s32.totalorder %s18, 0
    %p81 = por %p79, %p80
    %p82 = scmp.ne.s32.totalorder %s68, %s69
    %p83 = scmp.eq.s32.totalorder %s19, 1
    %p84 = por %p82, %p83
    %p86 = scmp.ne.s32.totalorder %s69, %s85
    %p87 = scmp.eq.s32.totalorder %s19, 0
    %p88 = por %p86, %p87
    %s89 = ssub.s32 %s20, %s32
    %s90 = ssub.s32 %s21, %s28
    %s91 = sor.u32 %s89, %s90
    %p92 = scmp.eq.s32.totalorder %s91, 0
    %s94 = sadd.s32 %s93, 1
    %s95 = scalar_select %p92, %s93, %s94
    %p98 = pneg %p92
    %p99 = scmp.eq.s32.totalorder %s13, 1
    %p100 = por %p98, %p99
    %p101 = scmp.ne.s32.totalorder %s93, %s96
    %p102 = scmp.eq.s32.totalorder %s13, 0
    %p103 = por %p101, %p102
    %p104 = scmp.ne.s32.totalorder %s93, %s96
    %p105 = scmp.eq.s32.totalorder %s18, 1
    %p106 = por %p104, %p105
    %p107 = scmp.ne.s32.totalorder %s96, %s97
    %p108 = scmp.eq.s32.totalorder %s18, 0
    %p109 = por %p107, %p108
    %p110 = scmp.ne.s32.totalorder %s96, %s97
    %p111 = scmp.eq.s32.totalorder %s19, 1
    %p112 = por %p110, %p111
    %p114 = scmp.ne.s32.totalorder %s97, %s113
    %p115 = scmp.eq.s32.totalorder %s19, 0
    %p116 = por %p114, %p115
    %s117 = sadd.s32 %s20, %s21
    %s118 = sadd.s32 %s32, %s28
    %s119 = ssub.s32 %s117, %s118
    %p120 = scmp.eq.s32.totalorder %s119, 0
    %s122 = sadd.s32 %s121, 1
    %s123 = scalar_select %p120, %s121, %s122
    %p126 = pneg %p120
    %p127 = scmp.eq.s32.totalorder %s13, 1
    %p128 = por %p126, %p127
    %p129 = scmp.ne.s32.totalorder %s121, %s124
    %p130 = scmp.eq.s32.totalorder %s13, 0
    %p131 = por %p129, %p130
    %p132 = scmp.ne.s32.totalorder %s121, %s124
    %p133 = scmp.eq.s32.totalorder %s18, 1
    %p134 = por %p132, %p133
    %p135 = scmp.ne.s32.totalorder %s124, %s125
    %p136 = scmp.eq.s32.totalorder %s18, 0
    %p137 = por %p135, %p136
    %p138 = scmp.ne.s32.totalorder %s124, %s125
    %p139 = scmp.eq.s32.totalorder %s19, 1
    %p140 = por %p138, %p139
    %p142 = scmp.ne.s32.totalorder %s125, %s141
    %p143 = scmp.eq.s32.totalorder %s19, 0
    %p144 = por %p142, %p143
    %s145 = ssub.s32 %s20, %s32
    %p146 = scmp.eq.s32.totalorder %s145, 0
    %s148 = sadd.s32 %s147, 1
    %s149 = scalar_select %p146, %s147, %s148
    %p152 = pneg %p146
    %p153 = scmp.eq.s32.totalorder %s13, 1
    %p154 = por %p152, %p153
    %p155 = scmp.ne.s32.totalorder %s147, %s150
    %p156 = scmp.eq.s32.totalorder %s13, 0
    %p157 = por %p155, %p156
    %p158 = scmp.ne.s32.totalorder %s147, %s150
    %p159 = scmp.eq.s32.totalorder %s18, 1
    %p160 = por %p158, %p159
    %p161 = scmp.ne.s32.totalorder %s150, %s151
    %p162 = scmp.eq.s32.totalorder %s18, 0
    %p163 = por %p161, %p162
    %p164 = scmp.ne.s32.totalorder %s150, %s151
    %p165 = scmp.eq.s32.totalorder %s19, 1
    %p166 = por %p164, %p165
    %p168 = scmp.ne.s32.totalorder %s151, %s167
    %p169 = scmp.eq.s32.totalorder %s19, 0
    %p170 = por %p168, %p169
    %s171 = ssub.s32 %s20, %s32
    %p172 = scmp.eq.s32.totalorder %s171, 0
    %s174 = sadd.s32 %s173, 1
    %s175 = scalar_select %p172, %s173, %s174
    %p178 = pneg %p172
    %p179 = scmp.eq.s32.totalorder %s13, 1
    %p180 = por %p178, %p179
    %p181 = scmp.ne.s32.totalorder %s173, %s176
    %p182 = scmp.eq.s32.totalorder %s13, 0
    %p183 = por %p181, %p182
    %p184 = scmp.ne.s32.totalorder %s173, %s176
    %p185 = scmp.eq.s32.totalorder %s18, 1
    %p186 = por %p184, %p185
    %p187 = scmp.ne.s32.totalorder %s176, %s177
    %p188 = scmp.eq.s32.totalorder %s18, 0
    %p189 = por %p187, %p188
    %p190 = scmp.ne.s32.totalorder %s176, %s177
    %p191 = scmp.eq.s32.totalorder %s19, 1
    %p192 = por %p190, %p191
    %p194 = scmp.ne.s32.totalorder %s177, %s193
    %p195 = scmp.eq.s32.totalorder %s19, 0
    %p196 = por %p194, %p195
    %s197 = ssub.s32 %s20, %s32
    %p198 = scmp.eq.s32.totalorder %s197, 0
    %s200 = sadd.s32 %s199, 1
    %s201 = scalar_select %p198, %s199, %s200
    %p204 = pneg %p198
    %p205 = scmp.eq.s32.totalorder %s13, 1
    %p206 = por %p204, %p205
    %p207 = scmp.ne.s32.totalorder %s199, %s202
    %p208 = scmp.eq.s32.totalorder %s13, 0
    %p209 = por %p207, %p208
    %p210 = scmp.ne.s32.totalorder %s199, %s202
    %p211 = scmp.eq.s32.totalorder %s18, 1
    %p212 = por %p210, %p211
    %p213 = scmp.ne.s32.totalorder %s202, %s203
    %p214 = scmp.eq.s32.totalorder %s18, 0
    %p215 = por %p213, %p214
    %p216 = scmp.ne.s32.totalorder %s202, %s203
    %p217 = scmp.eq.s32.totalorder %s19, 1
    %p218 = por %p216, %p217
    %p220 = scmp.ne.s32.totalorder %s203, %s219
    %p221 = scmp.eq.s32.totalorder %s19, 0
    %p222 = por %p220, %p221
    %p223 = scmp.le.s32.totalorder 1, %s13
    %p224 = scmp.lt.s32.totalorder %s13, 3
    %p225 = pnand %p223, %p224
    %p226 = pneg %p225
    // Predicated region
    $region9: #{hybird_v3_loss.2} parent=5 // pred_check
      _
    $region10: #{hybird_v3_loss.2} parent=5 // pred_check_branch
      %228 = sbr.rel (%p225) target = $region12
    $region11: #{hybird_v3_loss.2} parent=5 // pred_region
      %s229 = ssub.s32 %s13, 1
    $region12: #{hybird_v3_loss.2} parent=5 // pred_fallthru
      _
    %p230 = scmp.lt.s32.totalorder %s13, 2
    // Predicated region
    $region13: #{hybird_v3_loss.2} parent=5 // pred_check
      %p231 = pneg %p230
    $region14: #{hybird_v3_loss.2} parent=5 // pred_check_branch
      %233 = sbr.rel (%p231) target = $region16
    $region15: #{hybird_v3_loss.2} parent=5 // pred_region
      // Predicated region
      $region17: #{hybird_v3_loss.2} parent=15 // pred_check
        %p234 = pneg %p47
      $region18: #{hybird_v3_loss.2} parent=15 // pred_check_branch
        %236 = sbr.rel (%p234) target = $region20
      $region19: #{hybird_v3_loss.2} parent=15 // pred_region
        %s237 = smul.u32 2, %s21
        %p238 = scmp.lt.s32.totalorder %s20, 1
        %s239 = scalar_select %p238, %s20, 1
        %p240 = scmp.lt.s32.totalorder %s237, 1
        %s241 = scalar_select %p240, %s237, 1
        %s242 = smul.addr %s239, 2
        %s243 = sadd.s32 %s241, %s242
        %s244 = smul.addr %s243, 4
        %s245 = scalar_lea.vmem %s0, %s244
        %s246 = smul.u32 2, %s21
      $region20: #{hybird_v3_loss.2} parent=15 // pred_fallthru
        _
      // Predicated region
      $region21: #{hybird_v3_loss.2} parent=15 // pred_check
        %p247 = pneg %p75
      $region22: #{hybird_v3_loss.2} parent=15 // pred_check_branch
        %249 = sbr.rel (%p247) target = $region24
      $region23: #{hybird_v3_loss.2} parent=15 // pred_region
        %s250 = smul.u32 2, %s21
        %p251 = scmp.lt.s32.totalorder %s20, 1
        %s252 = scalar_select %p251, %s20, 1
        %p253 = scmp.lt.s32.totalorder %s250, 1
        %s254 = scalar_select %p253, %s250, 1
        %s255 = smul.addr %s252, 2
        %s256 = sadd.s32 %s254, %s255
        %s257 = smul.addr %s256, 4
        %s258 = scalar_lea.vmem %s1, %s257
        %s259 = smul.u32 2, %s21
      $region24: #{hybird_v3_loss.2} parent=15 // pred_fallthru
        _
      // Predicated region
      $region25: #{hybird_v3_loss.2} parent=15 // pred_check
        %p260 = pneg %p103
      $region26: #{hybird_v3_loss.2} parent=15 // pred_check_branch
        %262 = sbr.rel (%p260) target = $region28
      $region27: #{hybird_v3_loss.2} parent=15 // pred_region
        %s263 = smul.u32 2, %s21
        %p264 = scmp.lt.s32.totalorder %s20, 1
        %s265 = scalar_select %p264, %s20, 1
        %p266 = scmp.lt.s32.totalorder %s263, 1
        %s267 = scalar_select %p266, %s263, 1
        %s268 = smul.addr %s265, 2
        %s269 = sadd.s32 %s267, %s268
        %s270 = scalar_lea.vmem %s2, %s269
        %s271 = smul.u32 2, %s21
      $region28: #{hybird_v3_loss.2} parent=15 // pred_fallthru
        _
    $region16: #{hybird_v3_loss.2} parent=5 // pred_fallthru
      _
    %p272 = scmp.le.s32.totalorder 1, %s13
    %p273 = scmp.lt.s32.totalorder %s13, 3
    %p274 = pnand %p272, %p273
    %p275 = pneg %p274
    // Predicated region
    $region29: #{hybird_v3_loss.2} parent=5 // pred_check
      _
    $region30: #{hybird_v3_loss.2} parent=5 // pred_check_branch
      %277 = sbr.rel (%p274) target = $region32
    $region31: #{hybird_v3_loss.2} parent=5 // pred_region
      %s278 = ssub.s32 %s13, 1
      %s279 = smul.u32 2, %s23
      %p280 = scmp.lt.s32.totalorder %s22, 1
      %s281 = scalar_select %p280, %s22, 1
      %p282 = scmp.lt.s32.totalorder %s279, 1
      %s283 = scalar_select %p282, %s279, 1
      %s284 = smul.addr %s281, 2
      %s285 = sadd.s32 %s283, %s284
      %s286 = smul.addr %s285, 4
      %s287 = scalar_lea.vmem %s0, %s286
      %p288 = pneg %p53
      %p289 = pneg %p50
      %s290 = smul.u32 2, %s23
      %p291 = scmp.lt.s32.totalorder %s22, 1
      %s292 = scalar_select %p291, %s22, 1
      %p293 = scmp.lt.s32.totalorder %s290, 1
      %s294 = scalar_select %p293, %s290, 1
      %s295 = smul.addr %s292, 2
      %s296 = sadd.s32 %s294, %s295
      %s297 = smul.addr %s296, 4
      %s298 = scalar_lea.vmem %s1, %s297
      %p299 = pneg %p81
      %p300 = pneg %p78
      %s301 = smul.u32 2, %s23
      %p302 = scmp.lt.s32.totalorder %s22, 1
      %s303 = scalar_select %p302, %s22, 1
      %p304 = scmp.lt.s32.totalorder %s301, 1
      %s305 = scalar_select %p304, %s301, 1
      %s306 = smul.addr %s303, 2
      %s307 = sadd.s32 %s305, %s306
      %s308 = scalar_lea.vmem %s2, %s307
      %p309 = pneg %p109
      %p310 = pneg %p106
      %p311 = pneg %p137
      %p312 = pneg %p134
      %s313 = sadd.s32 %s22, %s23
      %s314 = smul.u32 2, %s313
      %p315 = scmp.lt.s32.totalorder %s314, 3
      %s316 = scalar_select %p315, %s314, 3
      %s317 = smul.addr %s316, 4
      %s318 = scalar_lea.vmem %s3, %s317
      %p319 = pneg %p163
      %p320 = pneg %p160
      %p321 = scmp.lt.s32.totalorder %s22, 1
      %s322 = scalar_select %p321, %s22, 1
      %s323 = scalar_lea.vmem %s4, %s322
      %p324 = pneg %p189
      %p325 = pneg %p186
      %p326 = scmp.lt.s32.totalorder %s22, 1
      %s327 = scalar_select %p326, %s22, 1
      %s328 = scalar_lea.vmem %s5, %s327
      %p329 = pneg %p215
      %p330 = pneg %p212
      %p331 = scmp.lt.s32.totalorder %s22, 1
      %s332 = scalar_select %p331, %s22, 1
      %s333 = smul.addr %s332, 4
      %s334 = scalar_lea.vmem %s6, %s333
      %s335 = smul.u32 2, %s23
      %p336 = scmp.lt.s32.totalorder %s22, 1
      %s337 = scalar_select %p336, %s22, 1
      %p338 = scmp.lt.s32.totalorder %s335, 1
      %s339 = scalar_select %p338, %s335, 1
      %s340 = smul.addr %s337, 2
      %s341 = sadd.s32 %s339, %s340
      %s342 = smul.addr %s341, 4
      %s343 = scalar_lea.vmem %s0, %s342
      %s344 = smul.u32 2, %s23
      %s345 = smul.u32 2, %s23
      %p346 = scmp.lt.s32.totalorder %s22, 1
      %s347 = scalar_select %p346, %s22, 1
      %p348 = scmp.lt.s32.totalorder %s345, 1
      %s349 = scalar_select %p348, %s345, 1
      %s350 = smul.addr %s347, 2
      %s351 = sadd.s32 %s349, %s350
      %s352 = smul.addr %s351, 4
      %s353 = scalar_lea.vmem %s1, %s352
      %s354 = smul.u32 2, %s23
      %s355 = smul.u32 2, %s23
      %p356 = scmp.lt.s32.totalorder %s22, 1
      %s357 = scalar_select %p356, %s22, 1
      %p358 = scmp.lt.s32.totalorder %s355, 1
      %s359 = scalar_select %p358, %s355, 1
      %s360 = smul.addr %s357, 2
      %s361 = sadd.s32 %s359, %s360
      %s362 = scalar_lea.vmem %s2, %s361
      %s363 = smul.u32 2, %s23
      %s364 = sadd.s32 %s22, %s23
      %s365 = smul.u32 2, %s364
      %p366 = scmp.lt.s32.totalorder %s365, 3
      %s367 = scalar_select %p366, %s365, 3
      %s368 = smul.addr %s367, 4
      %s369 = scalar_lea.vmem %s3, %s368
      %s370 = sadd.s32 %s22, %s23
      %s371 = smul.u32 2, %s370
      %p372 = scmp.lt.s32.totalorder %s22, 1
      %s373 = scalar_select %p372, %s22, 1
      %s374 = scalar_lea.vmem %s4, %s373
      %p375 = scmp.lt.s32.totalorder %s22, 1
      %s376 = scalar_select %p375, %s22, 1
      %s377 = scalar_lea.vmem %s5, %s376
      %p378 = scmp.lt.s32.totalorder %s22, 1
      %s379 = scalar_select %p378, %s22, 1
      %s380 = smul.addr %s379, 4
      %s381 = scalar_lea.vmem %s6, %s380
      %p382 = scmp.eq.s32.totalorder %s23, 0
      // Predicated region
      $region33: #{hybird_v3_loss.2} parent=31 // pred_check
        %p383 = pneg %p382
      $region34: #{hybird_v3_loss.2} parent=31 // pred_check_branch
        %385 = sbr.rel (%p383) target = $region36
      $region35: #{hybird_v3_loss.2} parent=31 // pred_region
        %386 = vst [vmem:[%s374] sm:$0x1] 0.0
        %387 = vst [vmem:[%s377] sm:$0x1] 0.0
        %vm388 = vcmask 3072
        %389 = vst.msk [vmem:[%s381] sm:$0xf] %vm388, 0.0
      $region36: #{hybird_v3_loss.2} parent=31 // pred_fallthru
        _
      %v390 = vlaneseq
      %v391 = vand.u32 %v390, 127
      %v392 = vadd.s32 %v391, 128
      %v393 = vlaneseq
      %v394 = vshrl.u32 %v393, 7
      %v395 = vcvt.s32.f32 %v394
      %v396 = vld [vmem:[%s343] sm:$0xff]
      %v397 = vld [vmem:[%s353] sm:$0xff]
      %v398 = vld [vmem:[%s362] sm:$0x3]
      %s399 = smul.u32 %s23, 256
      %v400 = vstv %s399
      %v401 = vadd.s32 %v400, %v391
      %v402 = vadd.s32 %v400, %v392
      %vm403 = vcmp.lt.s32.totalorder %v401, 256
      %vm404 = vcmp.lt.s32.totalorder %v402, 256
      %vm405 = vcmp.ne.f32.partialorder %v398, 0.0
      %v406 = vsel %vm403, 1, 0
      %v407 = vsel %vm404, 1, 0
      %v408 = vrot.slane %v407, 7
      %vm409 = vcmask 1040384
      %v410 = vsel %vm409, %v406, %v408
      %vm411 = vcmp.ne.s32.totalorder %v410, 0
      %vm412 = vmand %vm405, %vm411
      %vm413 = vcmp.eq.s32.totalorder %v406, 1
      %vm414 = vcmp.eq.s32.totalorder %v407, 1
      %416 = vst [vmem:[#allocation1] ss:$2 sm:$0xff] %v396
      %v417 = vld.sshfl [vmem:[#allocation1] sm:$0xff pattern:$0x75316420]
      %v418 = vld.sshfl [vmem:[#allocation1 + $0x8] sm:$0xff pattern:$0x75316420]
      %v421 = vsel %vm413, %v417, 0.0
      %v422 = vsel %vm414, %v418, 0.0
      %424 = vst [vmem:[#allocation1] ss:$2 sm:$0xff] %v397
      %v425 = vld.sshfl [vmem:[#allocation1] sm:$0xff pattern:$0x75316420]
      %v426 = vld.sshfl [vmem:[#allocation1 + $0x8] sm:$0xff pattern:$0x75316420]
      %vm429 = vcmask 1043456
      %v430 = vsel %vm429, %v425, -inf
      %v431 = vrot.slane %v430, 4
      %v432 = vmax.f32 %v430, %v431
      %v433 = vrot.slane %v432, 2
      %v434 = vmax.f32 %v432, %v433
      %v435 = vrot.slane %v434, 1
      %v436 = vmax.f32 %v434, %v435
      %v437 = vsel %vm429, %v426, -inf
      %v438 = vrot.slane %v437, 4
      %v439 = vmax.f32 %v437, %v438
      %v440 = vrot.slane %v439, 2
      %v441 = vmax.f32 %v439, %v440
      %v442 = vrot.slane %v441, 1
      %v443 = vmax.f32 %v441, %v442
      %v446 = vrot.slane %v443, 4
      %v447 = vsel %vm429, %v436, %v446
      %vm449 = vcmp.eq.f32.partialorder %v397, %v447
      %v452 = vunpack.c.l.s4 839922192
      %v453 = vunpack.c.0.s8 %v452
      %v454 = vperm.slane %v395, %v453
      %v456 = vsel %vm449, %v454, 4.0
      %458 = vst [vmem:[#allocation1] ss:$2 sm:$0xff] %v456
      %v459 = vld.sshfl [vmem:[#allocation1] sm:$0xff pattern:$0x75316420]
      %v460 = vld.sshfl [vmem:[#allocation1 + $0x8] sm:$0xff pattern:$0x75316420]
      %v463 = vsel %vm429, %v459, inf
      %v464 = vrot.slane %v463, 4
      %v465 = vmin.f32 %v463, %v464
      %v466 = vrot.slane %v465, 2
      %v467 = vmin.f32 %v465, %v466
      %v468 = vrot.slane %v467, 1
      %v469 = vmin.f32 %v467, %v468
      %v470 = vsel %vm429, %v460, inf
      %v471 = vrot.slane %v470, 4
      %v472 = vmin.f32 %v470, %v471
      %v473 = vrot.slane %v472, 2
      %v474 = vmin.f32 %v472, %v473
      %v475 = vrot.slane %v474, 1
      %v476 = vmin.f32 %v474, %v475
      %vm477 = vcmp.eq.f32.partialorder %v395, %v469
      %vm478 = vcmp.eq.f32.partialorder %v395, %v476
      %v479 = vsel %vm412, 1, 0
      %v480 = vperm.slane %v479, 0
      %v481 = vperm.slane %v479, 1
      %vm482 = vcmp.eq.s32.totalorder %v480, 1
      %vm483 = vcmp.eq.s32.totalorder %v481, 1
      %vm484 = vmand %vm477, %vm482
      %vm485 = vmand %vm478, %vm483
      %v486 = vsel %vm484, 1, 0
      %v487 = vsel %vm485, 1, 0
      %v488 = vcvt.s32.f32 %v486
      %v489 = vcvt.s32.f32 %v487
      %v490 = vsel %vm429, %v421, -inf
      %v491 = vrot.slane %v490, 4
      %v492 = vmax.f32 %v490, %v491
      %v493 = vrot.slane %v492, 2
      %v494 = vmax.f32 %v492, %v493
      %v495 = vrot.slane %v494, 1
      %v496 = vmax.f32 %v494, %v495
      %v497 = vsel %vm429, %v422, -inf
      %v498 = vrot.slane %v497, 4
      %v499 = vmax.f32 %v497, %v498
      %v500 = vrot.slane %v499, 2
      %v501 = vmax.f32 %v499, %v500
      %v502 = vrot.slane %v501, 1
      %v503 = vmax.f32 %v501, %v502
      %v504 = vsub.f32 %v421, %v496
      %v505 = vsub.f32 %v422, %v503
      %v506 = vmul.f32 %v504, 1.442695
      %v507 = vpow.pop %v506
      %v508 = vmul.f32 %v505, 1.442695
      %v509 = vpow.pop %v508
      %v510 = vsel %vm429, %v507, 0.0
      %v511 = vrot.slane %v510, 4
      %v512 = vadd.f32 %v510, %v511
      %v513 = vrot.slane %v512, 2
      %v514 = vadd.f32 %v512, %v513
      %v515 = vrot.slane %v514, 1
      %v516 = vadd.f32 %v514, %v515
      %v517 = vsel %vm429, %v509, 0.0
      %v518 = vrot.slane %v517, 4
      %v519 = vadd.f32 %v517, %v518
      %v520 = vrot.slane %v519, 2
      %v521 = vadd.f32 %v519, %v520
      %v522 = vrot.slane %v521, 1
      %v523 = vadd.f32 %v521, %v522
      %v524 = vrcp.pop %v516
      %v525 = vmul.f32 %v516, %v524
      %v526 = vsub.f32 1.0, %v525
      %v527 = vmul.f32 %v524, %v526
      %v528 = vadd.f32 %v524, %v527
      %vm529 = vweird.f32 %v516
      %vm530 = vweird.f32 %v524
      %vm531 = vmor %vm529, %vm530
      %v532 = vsel %vm531, %v524, %v528
      %v533 = vand.u32 2147483647, %v516
      %vm534 = vcmp.eq.f32.partialorder %v533, 8.507059e+37
      %v535 = vand.u32 %v516, 2147483648
      %v536 = vor.u32 1.1754944e-38, %v535
      %v537 = vsel %vm534, %v536, %v532
      %v538 = vmul.f32 1.0, %v537
      %v539 = vrcp.pop %v523
      %v540 = vmul.f32 %v523, %v539
      %v541 = vsub.f32 1.0, %v540
      %v542 = vmul.f32 %v539, %v541
      %v543 = vadd.f32 %v539, %v542
      %vm544 = vweird.f32 %v523
      %vm545 = vweird.f32 %v539
      %vm546 = vmor %vm544, %vm545
      %v547 = vsel %vm546, %v539, %v543
      %v548 = vand.u32 2147483647, %v523
      %vm549 = vcmp.eq.f32.partialorder %v548, 8.507059e+37
      %v550 = vand.u32 %v523, 2147483648
      %v551 = vor.u32 1.1754944e-38, %v550
      %v552 = vsel %vm549, %v551, %v547
      %v553 = vmul.f32 1.0, %v552
      %v554 = vmul.f32 %v507, %v538
      %v555 = vmul.f32 %v509, %v553
      %v556 = vlog2.pop %v516
      %v557 = vmul.f32 %v556, 0.6931472
      %v558 = vlog2.pop %v523
      %v559 = vmul.f32 %v558, 0.6931472
      %v560 = vsub.f32 %v504, %v557
      %v561 = vsub.f32 %v505, %v559
      %v562 = vcvt.s32.f32 %v479
      %v563 = vmul.f32 %v488, %v560
      %v564 = vmul.f32 %v489, %v561
      %v565 = vsel %vm429, %v563, 0.0
      %v566 = vrot.slane %v565, 4
      %v567 = vadd.f32 %v565, %v566
      %v568 = vrot.slane %v567, 2
      %v569 = vadd.f32 %v567, %v568
      %v570 = vrot.slane %v569, 1
      %v571 = vadd.f32 %v569, %v570
      %v572 = vsel %vm429, %v564, 0.0
      %v573 = vrot.slane %v572, 4
      %v574 = vadd.f32 %v572, %v573
      %v575 = vrot.slane %v574, 2
      %v576 = vadd.f32 %v574, %v575
      %v577 = vrot.slane %v576, 1
      %v578 = vadd.f32 %v576, %v577
      %v579 = vsub.f32 0.0, %v571
      %v580 = vsub.f32 0.0, %v578
      %v581 = vsub.f32 %v488, %v554
      %v582 = vsub.f32 %v489, %v555
      %v583 = vand.u32 2147483647, %v581
      %v584 = vand.u32 2147483647, %v582
      %v586 = vperm.slane %v562, 0
      %v587 = vperm.slane %v562, 1
      %v590 = vmul.f32 %v583, %v586
      %v591 = vmul.f32 %v584, %v587
      %v594 = vand.u32 %v590, 4294967294
      %v595 = vand.u32 %v591, 4294967294
      %v596 = vsel %vm484, 2147483649, 2147483648
      %v597 = vsel %vm485, 2147483649, 2147483648
      %v598 = vor.u32 %v594, %v596
      %v599 = vor.u32 %v595, %v597
      %v600 = vrot.slane %v599, 4
      %v601 = vsel %vm429, %v598, %v600
      %603 = vst [vmem:[%s369] sm:$0xff] %v601
      %v604 = vadd.f32 %v579, 0.0
      %v605 = vadd.f32 %v580, 0.0
      %v606 = vadd.f32 %v562, 0.0
      %v607 = vadd.f32 %v488, 0.0
      %v608 = vadd.f32 %v489, 0.0
      %v609 = vld [vmem:[%s374] sm:$0x1]
      %v610 = vsel %vm409, %v604, 0.0
      %v611 = vsel %vm409, %v605, 0.0
      %v612 = vadd.f32 %v610, %v611
      %613 = vadd.xlane.f32.xlu0 %v612
      %v614 = vpop.xlane.xlu0 %613
      %v615 = vrot.slane %v614, 4
      %v616 = vadd.f32 %v614, %v615
      %v617 = vrot.slane %v616, 2
      %v618 = vadd.f32 %v616, %v617
      %v619 = vrot.slane %v618, 1
      %v620 = vadd.f32 %v618, %v619
      %s621 = vtos %v620
      %v622 = vstv %s621
      %v623 = vadd.f32 %v609, %v622
      %624 = vst [vmem:[%s374] sm:$0x1] %v623
      %v625 = vld [vmem:[%s377] sm:$0x1]
      %v627 = vperm.slane %v606, 0
      %v628 = vperm.slane %v606, 1
      %v631 = vsel %vm409, %v627, 0.0
      %v632 = vsel %vm409, %v628, 0.0
      %v633 = vadd.f32 %v631, %v632
      %634 = vadd.xlane.f32.xlu0 %v633
      %v635 = vpop.xlane.xlu0 %634
      %v636 = vrot.slane %v635, 4
      %v637 = vadd.f32 %v635, %v636
      %v638 = vrot.slane %v637, 2
      %v639 = vadd.f32 %v637, %v638
      %v640 = vrot.slane %v639, 1
      %v641 = vadd.f32 %v639, %v640
      %s642 = vtos %v641
      %v643 = vstv %s642
      %v644 = vadd.f32 %v625, %v643
      %645 = vst [vmem:[%s377] sm:$0x1] %v644
      %v646 = vld [vmem:[%s381] sm:$0xf]
      %v647 = vsel %vm429, %v607, 0.0
      %v648 = vsel %vm429, %v608, 0.0
      %v649 = vadd.f32 %v647, %v648
      %650 = vadd.xlane.f32.xlu0 %v649
      %v651 = vpop.xlane.xlu0 %650
      %v652 = vadd.f32 %v646, %v651
      %vm653 = vcmask 3072
      %654 = vst.msk [vmem:[%s381] sm:$0xf] %vm653, %v652
      %s655 = sadd.s32 %s22, %s23
      %s656 = smul.u32 2, %s655
      %p657 = scmp.lt.s32.totalorder %s656, 3
      %s658 = scalar_select %p657, %s656, 3
      %s659 = smul.addr %s658, 4
      %s660 = scalar_lea.vmem %s3, %s659
      %p661 = scmp.lt.s32.totalorder %s22, 1
      %s662 = scalar_select %p661, %s22, 1
      %s663 = scalar_lea.vmem %s4, %s662
      %p664 = scmp.lt.s32.totalorder %s22, 1
      %s665 = scalar_select %p664, %s22, 1
      %s666 = scalar_lea.vmem %s5, %s665
      %p667 = scmp.lt.s32.totalorder %s22, 1
      %s668 = scalar_select %p667, %s22, 1
      %s669 = smul.addr %s668, 4
      %s670 = scalar_lea.vmem %s6, %s669
      // Predicated region
      $region37: #{hybird_v3_loss.2} parent=31 // pred_check
        %p671 = pneg %p134
      $region38: #{hybird_v3_loss.2} parent=31 // pred_check_branch
        %673 = sbr.rel (%p671) target = $region40
      $region39: #{hybird_v3_loss.2} parent=31 // pred_region
        %s674 = sadd.s32 %s22, %s23
        %s675 = smul.u32 2, %s674
      $region40: #{hybird_v3_loss.2} parent=31 // pred_fallthru
        _
      // Predicated region
      $region41: #{hybird_v3_loss.2} parent=31 // pred_check
        %p676 = pneg %p160
      $region42: #{hybird_v3_loss.2} parent=31 // pred_check_branch
        %678 = sbr.rel (%p676) target = $region44
      $region43: #{hybird_v3_loss.2} parent=31 // pred_region
        _
      $region44: #{hybird_v3_loss.2} parent=31 // pred_fallthru
        _
      // Predicated region
      $region45: #{hybird_v3_loss.2} parent=31 // pred_check
        %p679 = pneg %p186
      $region46: #{hybird_v3_loss.2} parent=31 // pred_check_branch
        %681 = sbr.rel (%p679) target = $region48
      $region47: #{hybird_v3_loss.2} parent=31 // pred_region
        _
      $region48: #{hybird_v3_loss.2} parent=31 // pred_fallthru
        _
      // Predicated region
      $region49: #{hybird_v3_loss.2} parent=31 // pred_check
        %p682 = pneg %p212
      $region50: #{hybird_v3_loss.2} parent=31 // pred_check_branch
        %684 = sbr.rel (%p682) target = $region52
      $region51: #{hybird_v3_loss.2} parent=31 // pred_region
        _
      $region52: #{hybird_v3_loss.2} parent=31 // pred_fallthru
        _
    $region32: #{hybird_v3_loss.2} parent=5 // pred_fallthru
      _
    %p685 = scmp.le.s32.totalorder 2, %s13
    // Predicated region
    $region53: #{hybird_v3_loss.2} parent=5 // pred_check
      %p686 = pneg %p685
    $region54: #{hybird_v3_loss.2} parent=5 // pred_check_branch
      %688 = sbr.rel (%p686) target = $region56
    $region55: #{hybird_v3_loss.2} parent=5 // pred_region
      %s689 = ssub.s32 %s13, 2
      // Predicated region
      $region57: #{hybird_v3_loss.2} parent=55 // pred_check
        %p690 = pneg %p140
      $region58: #{hybird_v3_loss.2} parent=55 // pred_check_branch
        %692 = sbr.rel (%p690) target = $region60
      $region59: #{hybird_v3_loss.2} parent=55 // pred_region
        %s693 = sadd.s32 %s24, %s25
        %s694 = smul.u32 2, %s693
        %p695 = scmp.lt.s32.totalorder %s694, 3
        %s696 = scalar_select %p695, %s694, 3
        %s697 = smul.addr %s696, 4
        %s698 = scalar_lea.vmem %s3, %s697
      $region60: #{hybird_v3_loss.2} parent=55 // pred_fallthru
        _
      // Predicated region
      $region61: #{hybird_v3_loss.2} parent=55 // pred_check
        %p699 = pneg %p166
      $region62: #{hybird_v3_loss.2} parent=55 // pred_check_branch
        %701 = sbr.rel (%p699) target = $region64
      $region63: #{hybird_v3_loss.2} parent=55 // pred_region
        %p702 = scmp.lt.s32.totalorder %s24, 1
        %s703 = scalar_select %p702, %s24, 1
        %s704 = scalar_lea.vmem %s4, %s703
      $region64: #{hybird_v3_loss.2} parent=55 // pred_fallthru
        _
      // Predicated region
      $region65: #{hybird_v3_loss.2} parent=55 // pred_check
        %p705 = pneg %p192
      $region66: #{hybird_v3_loss.2} parent=55 // pred_check_branch
        %707 = sbr.rel (%p705) target = $region68
      $region67: #{hybird_v3_loss.2} parent=55 // pred_region
        %p708 = scmp.lt.s32.totalorder %s24, 1
        %s709 = scalar_select %p708, %s24, 1
        %s710 = scalar_lea.vmem %s5, %s709
      $region68: #{hybird_v3_loss.2} parent=55 // pred_fallthru
        _
      // Predicated region
      $region69: #{hybird_v3_loss.2} parent=55 // pred_check
        %p711 = pneg %p218
      $region70: #{hybird_v3_loss.2} parent=55 // pred_check_branch
        %713 = sbr.rel (%p711) target = $region72
      $region71: #{hybird_v3_loss.2} parent=55 // pred_region
        %p714 = scmp.lt.s32.totalorder %s24, 1
        %s715 = scalar_select %p714, %s24, 1
        %s716 = smul.addr %s715, 4
        %s717 = scalar_lea.vmem %s6, %s716
      $region72: #{hybird_v3_loss.2} parent=55 // pred_fallthru
        _
    $region56: #{hybird_v3_loss.2} parent=5 // pred_fallthru
      _
  $region6: #{hybird_v3_loss.2} parent=0 // loop_footer
    %s17 = sadd.s32 1, %s13
  $region7: #{hybird_v3_loss.2} parent=0 // loop_footer_branch
    %12 = sbr.rel target = $region3
  $region8: #{hybird_v3_loss.2} parent=0 // loop_exit
    _

// kernel: hybird_v3_loss.3
$region0: #{hybird_v3_loss.3}
  #allocation0 [shape = 'u32[]', space=smem, size = 0x4, offset = 0x4, fixed_abs, tag = 'smem constant byte address 0x4 - core index']
  #allocation1 [shape = 'u32[72,128]{1,0:T(1,128)}', space=vmem, size = 0x9000, scoped, tag = 'internal scratch']
  #allocation2 [shape = 'f32[4,1]{1,0:T(4,128)}', space=vmem, size = 0x800, scoped, tag = 'scratch operand']
  #allocation3 [shape = 'f32[4,1]{1,0:T(4,128)}', space=vmem, size = 0x800, scoped, tag = 'scratch operand']
  %s0 = inlined_call_operand.vmem [shape: f32[4,512], index: 0, kind: input, shape index: {}]
  %s1 = inlined_call_operand.vmem [shape: f32[4,1], index: 1, kind: input, shape index: {}]
  %s2 = inlined_call_operand.vmem [shape: f32[4,1], index: 2, kind: output, shape index: {}]
  %s3 = sld [smem:[#allocation0]]
  $region45: #{hybird_v3_loss.3} parent=0
    _
  %s5 = ssub.s32 1, %s3
  %s6 = scalar_select 0, %s5, %s3
  loop: start=0, step=1, limit=4
  $region2: #{hybird_v3_loss.3} parent=0 // loop_pre_header
    _
  $region3: #{hybird_v3_loss.3} parent=0 // loop_header
    %s8 = sphi 0, %s12
    %p9 = scmp.ge.s32.totalorder %s8, 4
    %s18 = sphi 0, %s20
    %s21 = sphi 0, %s18
    %s22 = sphi 0, %s21
    %s38 = sphi 0, %s22
    %s42 = sphi 0, %s42
    %s44 = sphi 0, %s42
    %s45 = sphi 0, %s44
    %s59 = sphi 0, %s45
    %s63 = sphi 0, %s63
    %s65 = sphi 0, %s63
    %s66 = sphi 0, %s65
    %s80 = sphi 0, %s66
  $region4: #{hybird_v3_loss.3} parent=0 // loop_header_branch
    %11 = sbr.rel (%p9) target = $region8
  $region5: #{hybird_v3_loss.3} parent=0 // loop_body
    %s13 = ssub.s32 %s8, 1
    %s14 = ssub.s32 %s8, 2
    %s15 = sadd.s32 %s8, 1
    %s16 = ssub.s32 %s8, %s15
    %p17 = scmp.eq.s32.totalorder %s16, 0
    %s19 = sadd.s32 %s18, 1
    %s20 = scalar_select %p17, %s18, %s19
    %p23 = pneg %p17
    %p24 = scmp.eq.s32.totalorder %s8, 1
    %p25 = por %p23, %p24
    %p26 = scmp.ne.s32.totalorder %s18, %s21
    %p27 = scmp.eq.s32.totalorder %s8, 0
    %p28 = por %p26, %p27
    %p29 = scmp.ne.s32.totalorder %s18, %s21
    %p30 = scmp.eq.s32.totalorder %s13, 1
    %p31 = por %p29, %p30
    %p32 = scmp.ne.s32.totalorder %s21, %s22
    %p33 = scmp.eq.s32.totalorder %s13, 0
    %p34 = por %p32, %p33
    %p35 = scmp.ne.s32.totalorder %s21, %s22
    %p36 = scmp.eq.s32.totalorder %s14, 1
    %p37 = por %p35, %p36
    %p39 = scmp.ne.s32.totalorder %s22, %s38
    %p40 = scmp.eq.s32.totalorder %s14, 0
    %p41 = por %p39, %p40
    %s43 = sadd.s32 %s42, 1
    %p46 = scmp.eq.s32.totalorder %s8, 1
    %p47 = scmp.ne.s32.totalorder %s42, %s44
    %p48 = scmp.eq.s32.totalorder %s8, 0
    %p49 = por %p47, %p48
    %p50 = scmp.ne.s32.totalorder %s42, %s44
    %p51 = scmp.eq.s32.totalorder %s13, 1
    %p52 = por %p50, %p51
    %p53 = scmp.ne.s32.totalorder %s44, %s45
    %p54 = scmp.eq.s32.totalorder %s13, 0
    %p55 = por %p53, %p54
    %p56 = scmp.ne.s32.totalorder %s44, %s45
    %p57 = scmp.eq.s32.totalorder %s14, 1
    %p58 = por %p56, %p57
    %p60 = scmp.ne.s32.totalorder %s45, %s59
    %p61 = scmp.eq.s32.totalorder %s14, 0
    %p62 = por %p60, %p61
    %s64 = sadd.s32 %s63, 1
    %p67 = scmp.eq.s32.totalorder %s8, 1
    %p68 = scmp.ne.s32.totalorder %s63, %s65
    %p69 = scmp.eq.s32.totalorder %s8, 0
    %p70 = por %p68, %p69
    %p71 = scmp.ne.s32.totalorder %s63, %s65
    %p72 = scmp.eq.s32.totalorder %s13, 1
    %p73 = por %p71, %p72
    %p74 = scmp.ne.s32.totalorder %s65, %s66
    %p75 = scmp.eq.s32.totalorder %s13, 0
    %p76 = por %p74, %p75
    %p77 = scmp.ne.s32.totalorder %s65, %s66
    %p78 = scmp.eq.s32.totalorder %s14, 1
    %p79 = por %p77, %p78
    %p81 = scmp.ne.s32.totalorder %s66, %s80
    %p82 = scmp.eq.s32.totalorder %s14, 0
    %p83 = por %p81, %p82
    %p84 = scmp.le.s32.totalorder 1, %s8
    %p85 = scmp.lt.s32.totalorder %s8, 3
    %p86 = pnand %p84, %p85
    %p87 = pneg %p86
    // Predicated region
    $region9: #{hybird_v3_loss.3} parent=5 // pred_check
      _
    $region10: #{hybird_v3_loss.3} parent=5 // pred_check_branch
      %89 = sbr.rel (%p86) target = $region12
    $region11: #{hybird_v3_loss.3} parent=5 // pred_region
      %s90 = ssub.s32 %s8, 1
      // Predicated region
      $region13: #{hybird_v3_loss.3} parent=11 // pred_check
        %p91 = pneg %p55
      $region14: #{hybird_v3_loss.3} parent=11 // pred_check_branch
        %93 = sbr.rel (%p91) target = $region16
      $region15: #{hybird_v3_loss.3} parent=11 // pred_region
        _
      $region16: #{hybird_v3_loss.3} parent=11 // pred_fallthru
        _
    $region12: #{hybird_v3_loss.3} parent=5 // pred_fallthru
      _
    %p94 = scmp.lt.s32.totalorder %s8, 2
    // Predicated region
    $region17: #{hybird_v3_loss.3} parent=5 // pred_check
      %p95 = pneg %p94
    $region18: #{hybird_v3_loss.3} parent=5 // pred_check_branch
      %97 = sbr.rel (%p95) target = $region20
    $region19: #{hybird_v3_loss.3} parent=5 // pred_region
      // Predicated region
      $region21: #{hybird_v3_loss.3} parent=19 // pred_check
        %p98 = pneg %p28
      $region22: #{hybird_v3_loss.3} parent=19 // pred_check_branch
        %100 = sbr.rel (%p98) target = $region24
      $region23: #{hybird_v3_loss.3} parent=19 // pred_region
        %s101 = smul.u32 2, %s8
        %p102 = scmp.lt.s32.totalorder %s101, 3
        %s103 = scalar_select %p102, %s101, 3
        %s104 = smul.addr %s103, 4
        %s105 = scalar_lea.vmem %s0, %s104
        %s106 = smul.u32 2, %s8
      $region24: #{hybird_v3_loss.3} parent=19 // pred_fallthru
        _
    $region20: #{hybird_v3_loss.3} parent=5 // pred_fallthru
      _
    %p107 = scmp.le.s32.totalorder 1, %s8
    %p108 = scmp.lt.s32.totalorder %s8, 3
    %p109 = pnand %p107, %p108
    %p110 = pneg %p109
    // Predicated region
    $region25: #{hybird_v3_loss.3} parent=5 // pred_check
      _
    $region26: #{hybird_v3_loss.3} parent=5 // pred_check_branch
      %112 = sbr.rel (%p109) target = $region28
    $region27: #{hybird_v3_loss.3} parent=5 // pred_region
      %s113 = ssub.s32 %s8, 1
      %s114 = smul.u32 2, %s13
      %p115 = scmp.lt.s32.totalorder %s114, 3
      %s116 = scalar_select %p115, %s114, 3
      %s117 = smul.addr %s116, 4
      %s118 = scalar_lea.vmem %s0, %s117
      %p119 = pneg %p34
      %p120 = pneg %p31
      %p121 = pneg %p55
      %p122 = pneg %p52
      %p123 = pneg %p76
      %p124 = pneg %p73
      %s125 = smul.u32 2, %s13
      %p126 = scmp.lt.s32.totalorder %s125, 3
      %s127 = scalar_select %p126, %s125, 3
      %s128 = smul.addr %s127, 4
      %s129 = scalar_lea.vmem %s0, %s128
      %s130 = smul.u32 2, %s13
      %p131 = scmp.eq.s32.totalorder %s13, 0
      // Predicated region
      $region29: #{hybird_v3_loss.3} parent=27 // pred_check
        %p132 = pneg %p131
      $region30: #{hybird_v3_loss.3} parent=27 // pred_check_branch
        %134 = sbr.rel (%p132) target = $region32
      $region31: #{hybird_v3_loss.3} parent=27 // pred_region
        %vm135 = vcmask 3072
        %136 = vst.msk [vmem:[%s2] sm:$0xf] %vm135, 0.0
        %137 = vst.msk [vmem:[#allocation2] sm:$0xf] %vm135, 0.0
        %138 = vst.msk [vmem:[#allocation3] sm:$0xf] %vm135, 0.0
      $region32: #{hybird_v3_loss.3} parent=27 // pred_fallthru
        _
      %v139 = vld [vmem:[%s1] sm:$0xf]
      %v140 = vlaneseq
      %v141 = vand.u32 %v140, 127
      %v142 = vadd.s32 %v141, 128
      %vm143 = vcmp.eq.s32.totalorder %v141, 0
      %vm144 = vcmp.eq.s32.totalorder %v142, 0
      %vm145 = vcmp.ge.s32.totalorder %v141, 1
      %vm146 = vcmp.ge.s32.totalorder %v142, 1
      %vm147 = vcmp.ge.s32.totalorder %v141, 2
      %vm148 = vcmp.ge.s32.totalorder %v142, 2
      %vm149 = vcmp.ge.s32.totalorder %v141, 4
      %vm150 = vcmp.ge.s32.totalorder %v142, 4
      %vm151 = vcmp.ge.s32.totalorder %v141, 8
      %vm152 = vcmp.ge.s32.totalorder %v142, 8
      %vm153 = vcmp.ge.s32.totalorder %v141, 16
      %vm154 = vcmp.ge.s32.totalorder %v142, 16
      %vm155 = vcmp.ge.s32.totalorder %v141, 32
      %vm156 = vcmp.ge.s32.totalorder %v142, 32
      %vm157 = vcmp.ge.s32.totalorder %v141, 64
      %vm158 = vcmp.ge.s32.totalorder %v142, 64
      %vm159 = vcmp.ge.s32.totalorder %v141, 128
      %vm160 = vcmp.ge.s32.totalorder %v142, 128
      %v161 = vld [vmem:[#allocation2] sm:$0xf]
      %v162 = vld [vmem:[#allocation3] sm:$0xf]
      %v163 = vld [vmem:[%s129] sm:$0xff]
      %165 = vst [vmem:[#allocation1] ss:$2 sm:$0xff] %v163
      %v166 = vld.sshfl [vmem:[#allocation1] sm:$0xff pattern:$0x75316420]
      %v167 = vld.sshfl [vmem:[#allocation1 + $0x8] sm:$0xff pattern:$0x75316420]
      %v168 = vand.u32 %v166, 1
      %v169 = vand.u32 %v167, 1
      %vm170 = vcmp.ne.s32.totalorder %v168, 0
      %vm171 = vcmp.ne.s32.totalorder %v169, 0
      %v172 = vsel %vm170, 1.0, 0.0
      %v173 = vsel %vm171, 1.0, 0.0
      %v174 = vand.u32 %v166, 4294967294
      %v175 = vand.u32 %v167, 4294967294
      %178 = vrot.lane.b32.xlu0 %v172, 1
      %v179 = vpop.permute.xlu0 %178
      %180 = vrot.lane.b32.xlu0 %v173, 1
      %v181 = vpop.permute.xlu0 %180
      %vm182 = vcmp.lt.s32.totalorder %v141, 1
      %v183 = vsel %vm182, %v179, %v181
      %v184 = vsel %vm182, %v181, %v179
      %v185 = vsel %vm145, %v184, 0.0
      %v186 = vsel %vm146, %v183, 0.0
      %v187 = vadd.f32 %v172, %v185
      %v188 = vadd.f32 %v173, %v186
      %189 = vrot.lane.b32.xlu0 %v187, 2
      %v190 = vpop.permute.xlu0 %189
      %191 = vrot.lane.b32.xlu0 %v188, 2
      %v192 = vpop.permute.xlu0 %191
      %vm193 = vcmp.lt.s32.totalorder %v141, 2
      %v194 = vsel %vm193, %v190, %v192
      %v195 = vsel %vm193, %v192, %v190
      %v196 = vsel %vm147, %v195, 0.0
      %v197 = vsel %vm148, %v194, 0.0
      %v198 = vadd.f32 %v187, %v196
      %v199 = vadd.f32 %v188, %v197
      %200 = vrot.lane.b32.xlu0 %v198, 4
      %v201 = vpop.permute.xlu0 %200
      %202 = vrot.lane.b32.xlu0 %v199, 4
      %v203 = vpop.permute.xlu0 %202
      %vm204 = vcmp.lt.s32.totalorder %v141, 4
      %v205 = vsel %vm204, %v201, %v203
      %v206 = vsel %vm204, %v203, %v201
      %v207 = vsel %vm149, %v206, 0.0
      %v208 = vsel %vm150, %v205, 0.0
      %v209 = vadd.f32 %v198, %v207
      %v210 = vadd.f32 %v199, %v208
      %211 = vrot.lane.b32.xlu0 %v209, 8
      %v212 = vpop.permute.xlu0 %211
      %213 = vrot.lane.b32.xlu0 %v210, 8
      %v214 = vpop.permute.xlu0 %213
      %vm215 = vcmp.lt.s32.totalorder %v141, 8
      %v216 = vsel %vm215, %v212, %v214
      %v217 = vsel %vm215, %v214, %v212
      %v218 = vsel %vm151, %v217, 0.0
      %v219 = vsel %vm152, %v216, 0.0
      %v220 = vadd.f32 %v209, %v218
      %v221 = vadd.f32 %v210, %v219
      %222 = vrot.lane.b32.xlu0 %v220, 16
      %v223 = vpop.permute.xlu0 %222
      %224 = vrot.lane.b32.xlu0 %v221, 16
      %v225 = vpop.permute.xlu0 %224
      %vm226 = vcmp.lt.s32.totalorder %v141, 16
      %v227 = vsel %vm226, %v223, %v225
      %v228 = vsel %vm226, %v225, %v223
      %v229 = vsel %vm153, %v228, 0.0
      %v230 = vsel %vm154, %v227, 0.0
      %v231 = vadd.f32 %v220, %v229
      %v232 = vadd.f32 %v221, %v230
      %233 = vrot.lane.b32.xlu0 %v231, 32
      %v234 = vpop.permute.xlu0 %233
      %235 = vrot.lane.b32.xlu0 %v232, 32
      %v236 = vpop.permute.xlu0 %235
      %vm237 = vcmp.lt.s32.totalorder %v141, 32
      %v238 = vsel %vm237, %v234, %v236
      %v239 = vsel %vm237, %v236, %v234
      %v240 = vsel %vm155, %v239, 0.0
      %v241 = vsel %vm156, %v238, 0.0
      %v242 = vadd.f32 %v231, %v240
      %v243 = vadd.f32 %v232, %v241
      %244 = vrot.lane.b32.xlu0 %v242, 64
      %v245 = vpop.permute.xlu0 %244
      %246 = vrot.lane.b32.xlu0 %v243, 64
      %v247 = vpop.permute.xlu0 %246
      %vm248 = vcmp.lt.s32.totalorder %v141, 64
      %v249 = vsel %vm248, %v245, %v247
      %v250 = vsel %vm248, %v247, %v245
      %v251 = vsel %vm157, %v250, 0.0
      %v252 = vsel %vm158, %v249, 0.0
      %v253 = vadd.f32 %v242, %v251
      %v254 = vadd.f32 %v243, %v252
      %v255 = vsel %vm159, %v254, 0.0
      %v256 = vsel %vm160, %v253, 0.0
      %v257 = vadd.f32 %v253, %v255
      %v258 = vadd.f32 %v254, %v256
      %260 = vset.pattern.permute.xlu0 0
      %261 = vperm.xlu0 %260, %v161
      %v262 = vpop.permute.xlu0 %261
      %v264 = vadd.f32 %v257, %v262
      %v265 = vadd.f32 %v258, %v262
      %s266 = smul.u32 %s13, 256
      %s267 = sadd.s32 %s266, 1
      %v268 = vstv %s267
      %v269 = vadd.s32 %v141, %v268
      %v270 = vadd.s32 %v142, %v268
      %v271 = vcvt.s32.f32 %v269
      %v272 = vcvt.s32.f32 %v270
      %274 = vset.pattern.permute.xlu0 0
      %275 = vperm.xlu0 %274, %v139
      %v276 = vpop.permute.xlu0 %275
      %v278 = vadd.f32 %v276, %v271
      %v279 = vadd.f32 %v276, %v272
      %v280 = vsub.f32 %v278, %v264
      %v281 = vsub.f32 %v279, %v265
      %v282 = vrcp.pop %v280
      %v283 = vmul.f32 %v280, %v282
      %v284 = vsub.f32 1.0, %v283
      %v285 = vmul.f32 %v282, %v284
      %v286 = vadd.f32 %v282, %v285
      %vm287 = vweird.f32 %v280
      %vm288 = vweird.f32 %v282
      %vm289 = vmor %vm287, %vm288
      %v290 = vsel %vm289, %v282, %v286
      %v291 = vand.u32 2147483647, %v280
      %vm292 = vcmp.eq.f32.partialorder %v291, 8.507059e+37
      %v293 = vand.u32 %v280, 2147483648
      %v294 = vor.u32 1.1754944e-38, %v293
      %v295 = vsel %vm292, %v294, %v290
      %v296 = vmul.f32 %v271, %v295
      %v297 = vrcp.pop %v281
      %v298 = vmul.f32 %v281, %v297
      %v299 = vsub.f32 1.0, %v298
      %v300 = vmul.f32 %v297, %v299
      %v301 = vadd.f32 %v297, %v300
      %vm302 = vweird.f32 %v281
      %vm303 = vweird.f32 %v297
      %vm304 = vmor %vm302, %vm303
      %v305 = vsel %vm304, %v297, %v301
      %v306 = vand.u32 2147483647, %v281
      %vm307 = vcmp.eq.f32.partialorder %v306, 8.507059e+37
      %v308 = vand.u32 %v281, 2147483648
      %v309 = vor.u32 1.1754944e-38, %v308
      %v310 = vsel %vm307, %v309, %v305
      %v311 = vmul.f32 %v272, %v310
      %312 = vrot.lane.b32.xlu0 %v296, 1
      %v313 = vpop.permute.xlu0 %312
      %314 = vrot.lane.b32.xlu0 %v311, 1
      %v315 = vpop.permute.xlu0 %314
      %v316 = vsel %vm182, %v313, %v315
      %v317 = vsel %vm182, %v315, %v313
      %319 = vset.pattern.permute.xlu0 0
      %320 = vperm.xlu0 %319, %v162
      %v321 = vpop.permute.xlu0 %320
      %v323 = vsel %vm143, %v321, %v317
      %v324 = vsel %vm144, %v321, %v316
      %v325 = vsub.f32 %v296, %v323
      %v326 = vsub.f32 %v311, %v324
      %v327 = vmul.f32 %v174, %v325
      %v328 = vmul.f32 %v175, %v326
      %v329 = vadd.f32 %v327, 0.0
      %v330 = vadd.f32 %v328, 0.0
      %v331 = vld [vmem:[%s2] sm:$0xf]
      %vm332 = vcmask 1043456
      %v333 = vsel %vm332, %v329, 0.0
      %v334 = vsel %vm332, %v330, 0.0
      %v335 = vadd.f32 %v333, %v334
      %336 = vadd.xlane.f32.xlu0 %v335
      %v337 = vpop.xlane.xlu0 %336
      %v338 = vadd.f32 %v331, %v337
      %vm339 = vcmask 3072
      %340 = vst.msk [vmem:[%s2] sm:$0xf] %vm339, %v338
      %342 = vrot.lane.b32.xlu0 %v265, 1
      %v343 = vpop.permute.xlu0 %342
      %345 = vst.msk [vmem:[#allocation2] sm:$0xf] %vm339, %v343
      %347 = vrot.lane.b32.xlu0 %v311, 1
      %v348 = vpop.permute.xlu0 %347
      %350 = vst.msk [vmem:[#allocation3] sm:$0xf] %vm339, %v348
      // Predicated region
      $region33: #{hybird_v3_loss.3} parent=27 // pred_check
        %p351 = pneg %p73
      $region34: #{hybird_v3_loss.3} parent=27 // pred_check_branch
        %353 = sbr.rel (%p351) target = $region36
      $region35: #{hybird_v3_loss.3} parent=27 // pred_region
        _
      $region36: #{hybird_v3_loss.3} parent=27 // pred_fallthru
        _
      // Predicated region
      $region37: #{hybird_v3_loss.3} parent=27 // pred_check
        %p354 = pneg %p73
      $region38: #{hybird_v3_loss.3} parent=27 // pred_check_branch
        %356 = sbr.rel (%p354) target = $region40
      $region39: #{hybird_v3_loss.3} parent=27 // pred_region
        _
      $region40: #{hybird_v3_loss.3} parent=27 // pred_fallthru
        _
    $region28: #{hybird_v3_loss.3} parent=5 // pred_fallthru
      _
    %p357 = scmp.le.s32.totalorder 2, %s8
    // Predicated region
    $region41: #{hybird_v3_loss.3} parent=5 // pred_check
      %p358 = pneg %p357
    $region42: #{hybird_v3_loss.3} parent=5 // pred_check_branch
      %360 = sbr.rel (%p358) target = $region44
    $region43: #{hybird_v3_loss.3} parent=5 // pred_region
      %s361 = ssub.s32 %s8, 2
    $region44: #{hybird_v3_loss.3} parent=5 // pred_fallthru
      _
  $region6: #{hybird_v3_loss.3} parent=0 // loop_footer
    %s12 = sadd.s32 1, %s8
  $region7: #{hybird_v3_loss.3} parent=0 // loop_footer_branch
    %7 = sbr.rel target = $region3
  $region8: #{hybird_v3_loss.3} parent=0 // loop_exit
    _

</llo_original>
